<compile_context>
chip_gen: v6e
topology: v6e:2x2x1
jax: 0.10.0
libtpu: 0.0.40
codegen_flags: <defaults>
</compile_context>

<pallas_src>
import functools

import jax
import jax.numpy as jnp
from jax.experimental import pallas as pl
from jax.experimental.pallas import tpu as pltpu


def _decoder_kernel(x_ref, m_ref, pre_w_ref, pre_b_ref,
                    in_w_ref, in_b_ref, rs_w_ref, rs_b_ref,
                    proj_w_ref, proj_b_ref, o_ref, hpad_ref,
                    *, n_layers, kernel_size, dilation_rate, hidden, seq_len,
                    pad_max):
    f32 = jnp.float32
    bf16 = jnp.bfloat16
    H, T, K = hidden, seq_len, kernel_size

    x = x_ref[0].astype(f32)            # (T, Cin)
    m = m_ref[0].astype(f32)            # (T, 1)

    # pre: 1x1 conv   h = pre(x * mask) * mask
    h = jnp.dot((x * m).astype(bf16), pre_w_ref[...],
                preferred_element_type=f32) + pre_b_ref[...]
    h = h * m                            # (T, H) f32

    # Zero the padded shift scratch once; halo rows stay 0 for every layer,
    # which reproduces the conv's zero padding.
    hpad_ref[...] = jnp.zeros_like(hpad_ref)

    skip = jnp.zeros((T, H), f32)
    for i in range(n_layers):
        d = dilation_rate ** i
        pad = (K * d - d) // 2

        # Write the current activation into the center of the padded scratch.
        hpad_ref[pl.ds(pad_max, T), :] = h

        # im2col: gather the K dilated taps as one lane-wide (T, K*H) slab.
        taps = [hpad_ref[pl.ds(pad_max + j * d - pad, T), :]
                for j in range(K)]
        slab = jnp.concatenate(taps, axis=-1).astype(bf16)     # (T, K*H)

        # Single fused matmul producing [tanh-half | sigmoid-half].
        z = jnp.dot(slab, in_w_ref[i], preferred_element_type=f32) + in_b_ref[i]
        # fused_add_tanh_sigmoid_multiply (g is None -> zeros, dropout p=0)
        acts = jnp.tanh(z[:, :H]) * jax.nn.sigmoid(z[:, H:])   # (T, H)

        # Fused res/skip 1x1 conv: columns [0:H) = res, [H:2H) = skip.
        rs = jnp.dot(acts.astype(bf16), rs_w_ref[i],
                     preferred_element_type=f32) + rs_b_ref[i]
        skip = skip + rs[:, H:]
        if i < n_layers - 1:
            h = (h + rs[:, :H]) * m

    skip = skip * m                      # WN output * mask
    # proj: 1x1 conv (output lane-padded to a multiple of 128), then * mask.
    y = jnp.dot(skip.astype(bf16), proj_w_ref[...],
                preferred_element_type=f32) + proj_b_ref[...]
    o_ref[0] = (y * m).astype(o_ref.dtype)


def decoder_pallas(x, x_mask, params, *, kernel_size, dilation_rate, n_layers):
    B, T, Cin = x.shape
    H = params["pre_w"].shape[1]
    MEL = params["proj_w"].shape[1]
    K, L = kernel_size, n_layers
    bf16 = jnp.bfloat16

    pad_max = max((K * dilation_rate ** i - dilation_rate ** i) // 2
                  for i in range(L))
    mel_pad = max(128, ((MEL + 127) // 128) * 128)

    # ---- fused / cast weights (weight-norm already folded in) ----
    pre_w = params["pre_w"].astype(bf16)                                # (Cin, H)
    pre_b = params["pre_b"].astype(jnp.float32)                         # (1, H)
    in_w = jnp.concatenate([params["in_wt"], params["in_ws"]], axis=-1)  # (L,K,H,2H)
    in_w = in_w.reshape(L, K * H, 2 * H).astype(bf16)                   # (L, K*H, 2H)
    in_b = jnp.concatenate([params["in_bt"], params["in_bs"]],
                           axis=-1).astype(jnp.float32)                 # (L, 1, 2H)
    rs_w = jnp.concatenate([params["res_w"], params["skip_w"]],
                           axis=-1).astype(bf16)                        # (L, H, 2H)
    rs_b = jnp.concatenate([params["res_b"], params["skip_b"]],
                           axis=-1).astype(jnp.float32)                 # (L, 1, 2H)
    proj_w = jnp.pad(params["proj_w"],
                     ((0, 0), (0, mel_pad - MEL))).astype(bf16)         # (H, 128)
    proj_b = jnp.pad(params["proj_b"],
                     ((0, 0), (0, mel_pad - MEL))).astype(jnp.float32)  # (1, 128)

    kern = functools.partial(
        _decoder_kernel, n_layers=L, kernel_size=K,
        dilation_rate=dilation_rate, hidden=H, seq_len=T, pad_max=pad_max)

    def bcast(ndim):
        return lambda b: (0,) * ndim

    in_specs = [
        pl.BlockSpec((1, T, Cin), lambda b: (b, 0, 0)),
        pl.BlockSpec((1, T, 1), lambda b: (b, 0, 0)),
        pl.BlockSpec(pre_w.shape, bcast(2)),
        pl.BlockSpec(pre_b.shape, bcast(2)),
        pl.BlockSpec(in_w.shape, bcast(3)),
        pl.BlockSpec(in_b.shape, bcast(3)),
        pl.BlockSpec(rs_w.shape, bcast(3)),
        pl.BlockSpec(rs_b.shape, bcast(3)),
        pl.BlockSpec(proj_w.shape, bcast(2)),
        pl.BlockSpec(proj_b.shape, bcast(2)),
    ]

    # TODO(synk): for realistic audio lengths (T ~ 50-100k) add a time-tiled
    # grid axis with a pad_max halo (or carried scratch) so whole-sequence
    # residency does not blow v7x's 64 MiB VMEM; at test sizes the whole
    # sequence fits comfortably.
    out = pl.pallas_call(
        kern,
        out_shape=jax.ShapeDtypeStruct((B, T, mel_pad), jnp.float32),
        grid=(B,),
        in_specs=in_specs,
        out_specs=pl.BlockSpec((1, T, mel_pad), lambda b: (b, 0, 0)),
        scratch_shapes=[pltpu.VMEM((T + 2 * pad_max, H), jnp.float32)],
        compiler_params=pltpu.CompilerParams(
            dimension_semantics=("parallel",),
            vmem_limit_bytes=32 * 1024 * 1024),
    )(x, x_mask, pre_w, pre_b, in_w, in_b, rs_w, rs_b, proj_w, proj_b)
    return out[:, :, :MEL]


def decoder_ref(x, x_mask, params, *, kernel_size, dilation_rate, n_layers):
    """Pure-JAX f32 reference (same math, explicit zero padding)."""
    K, L = kernel_size, n_layers
    H = params["pre_w"].shape[1]
    B, T, _ = x.shape
    hp_prec = jax.lax.Precision.HIGHEST
    m = x_mask
    h = jnp.einsum("btc,ch->bth", x * m, params["pre_w"],
                   precision=hp_prec) + params["pre_b"]
    h = h * m
    skip = jnp.zeros((B, T, H), jnp.float32)
    for i in range(L):
        d = dilation_rate ** i
        pad = (K * d - d) // 2
        hp = jnp.pad(h, ((0, 0), (pad, pad), (0, 0)))
        xt = jnp.zeros((B, T, H), jnp.float32) + params["in_bt"][i]
        xs = jnp.zeros((B, T, H), jnp.float32) + params["in_bs"][i]
        for j in range(K):
            hs = hp[:, j * d:j * d + T, :]
            xt = xt + jnp.einsum("btc,ch->bth", hs, params["in_wt"][i, j],
                                 precision=hp_prec)
            xs = xs + jnp.einsum("btc,ch->bth", hs, params["in_ws"][i, j],
                                 precision=hp_prec)
        acts = jnp.tanh(xt) * jax.nn.sigmoid(xs)
        skip = skip + jnp.einsum("btc,ch->bth", acts, params["skip_w"][i],
                                 precision=hp_prec) + params["skip_b"][i]
        if i < L - 1:
            res = jnp.einsum("btc,ch->bth", acts, params["res_w"][i],
                             precision=hp_prec) + params["res_b"][i]
            h = (h + res) * m
    skip = skip * m
    y = jnp.einsum("btc,cm->btm", skip, params["proj_w"],
                   precision=hp_prec) + params["proj_b"]
    return y * m


if __name__ == "__main__":
    # Decoder(in_channels=4, hidden_channels=32, kernel_size=5,
    #         dilation_rate=2, n_layers=3, mel_size=80, gin_channels=0)
    B, T = 2, 16
    IN_CH, HID, MEL = 4, 32, 80
    K, DIL, L = 5, 2, 3

    key = jax.random.PRNGKey(0)
    ks = jax.random.split(key, 14)
    s = 0.1

    res_w = s * jax.random.normal(ks[6], (L, HID, HID), jnp.float32)
    res_b = s * jax.random.normal(ks[7], (L, 1, HID), jnp.float32)
    # Last WN layer's res_skip conv only has `hidden` (skip) output channels;
    # its residual half does not exist -> zero it (never used anyway).
    res_w = res_w.at[L - 1].set(0.0)
    res_b = res_b.at[L - 1].set(0.0)

    params = dict(
        pre_w=s * jax.random.normal(ks[0], (IN_CH, HID), jnp.float32),
        pre_b=s * jax.random.normal(ks[1], (1, HID), jnp.float32),
        in_wt=s * jax.random.normal(ks[2], (L, K, HID, HID), jnp.float32),
        in_bt=s * jax.random.normal(ks[3], (L, 1, HID), jnp.float32),
        in_ws=s * jax.random.normal(ks[4], (L, K, HID, HID), jnp.float32),
        in_bs=s * jax.random.normal(ks[5], (L, 1, HID), jnp.float32),
        res_w=res_w,
        res_b=res_b,
        skip_w=s * jax.random.normal(ks[8], (L, HID, HID), jnp.float32),
        skip_b=s * jax.random.normal(ks[9], (L, 1, HID), jnp.float32),
        proj_w=s * jax.random.normal(ks[10], (HID, MEL), jnp.float32),
        proj_b=s * jax.random.normal(ks[11], (1, MEL), jnp.float32),
    )

    x = jax.random.normal(ks[12], (B, T, IN_CH), jnp.float32)
    lengths = jnp.array([T, T - 4])
    t_idx = jnp.arange(T)[None, :, None]
    x_mask = (t_idx < lengths[:, None, None]).astype(jnp.float32)  # (B, T, 1)

    out = decoder_pallas(x, x_mask, params,
                         kernel_size=K, dilation_rate=DIL, n_layers=L)
    out = jax.block_until_ready(out)

    ref = decoder_ref(x, x_mask, params,
                      kernel_size=K, dilation_rate=DIL, n_layers=L)
    assert out.shape == (B, T, MEL)
    # bf16 MXU inputs with f32 accumulation vs. f32-highest reference.
    assert jnp.allclose(out, ref, atol=2e-2, rtol=2e-2), \
        f"max abs diff = {jnp.max(jnp.abs(out - ref))}"

    print("KERNEL_OK")
</pallas_src>

<mosaic_0001>
module attributes {stable_mosaic.version = 11 : i64} {
  func.func @_decoder_kernel(%arg0: i32, %arg1: memref<1x16x4xf32, #tpu.memory_space<vmem>>, %arg2: memref<1x16x1xf32, #tpu.memory_space<vmem>>, %arg3: memref<4x32xbf16, #tpu.memory_space<vmem>>, %arg4: memref<1x32xf32, #tpu.memory_space<vmem>>, %arg5: memref<3x160x64xbf16, #tpu.memory_space<vmem>>, %arg6: memref<3x1x64xf32, #tpu.memory_space<vmem>>, %arg7: memref<3x32x64xbf16, #tpu.memory_space<vmem>>, %arg8: memref<3x1x64xf32, #tpu.memory_space<vmem>>, %arg9: memref<32x128xbf16, #tpu.memory_space<vmem>>, %arg10: memref<1x128xf32, #tpu.memory_space<vmem>>, %arg11: memref<1x16x128xf32, #tpu.memory_space<vmem>>, %arg12: memref<32x32xf32, #tpu.memory_space<vmem>>) attributes {dimension_semantics = [#tpu.dimension_semantics<parallel>], iteration_bounds = array<i64: 2>, scalar_prefetch = 0 : i64, scratch_operands = 1 : i64, tpu.core_type = #tpu.core_type<tc>, window_params = [{transform_indices = @transform_0, window_bounds = array<i64: 1, 16, 4>}, {transform_indices = @transform_1, window_bounds = array<i64: 1, 16, 1>}, {pipeline_mode = #tpu.pipeline_mode<synchronous>, transform_indices = @transform_2, window_bounds = array<i64: 4, 32>}, {pipeline_mode = #tpu.pipeline_mode<synchronous>, transform_indices = @transform_3, window_bounds = array<i64: 1, 32>}, {pipeline_mode = #tpu.pipeline_mode<synchronous>, transform_indices = @transform_4, window_bounds = array<i64: 3, 160, 64>}, {pipeline_mode = #tpu.pipeline_mode<synchronous>, transform_indices = @transform_5, window_bounds = array<i64: 3, 1, 64>}, {pipeline_mode = #tpu.pipeline_mode<synchronous>, transform_indices = @transform_6, window_bounds = array<i64: 3, 32, 64>}, {pipeline_mode = #tpu.pipeline_mode<synchronous>, transform_indices = @transform_7, window_bounds = array<i64: 3, 1, 64>}, {pipeline_mode = #tpu.pipeline_mode<synchronous>, transform_indices = @transform_8, window_bounds = array<i64: 32, 128>}, {pipeline_mode = #tpu.pipeline_mode<synchronous>, transform_indices = @transform_9, window_bounds = array<i64: 1, 128>}, {transform_indices = @transform_10, window_bounds = array<i64: 1, 16, 128>}]} {
    %c0 = arith.constant 0 : index
    %c0_0 = arith.constant 0 : index
    %c0_1 = arith.constant 0 : index
    %0 = vector.load %arg1[%c0, %c0_0, %c0_1] : memref<1x16x4xf32, #tpu.memory_space<vmem>>, vector<1x16x4xf32>
    %1 = vector.shape_cast %0 : vector<1x16x4xf32> to vector<16x4xf32>
    %c0_2 = arith.constant 0 : index
    %c0_3 = arith.constant 0 : index
    %c0_4 = arith.constant 0 : index
    %2 = vector.load %arg2[%c0_2, %c0_3, %c0_4] : memref<1x16x1xf32, #tpu.memory_space<vmem>>, vector<1x16x1xf32>
    %3 = vector.shape_cast %2 : vector<1x16x1xf32> to vector<16x1xf32>
    %4 = vector.broadcast %3 : vector<16x1xf32> to vector<16x4xf32>
    %5 = arith.mulf %1, %4 : vector<16x4xf32>
    %6 = arith.truncf %5 : vector<16x4xf32> to vector<16x4xbf16>
    %c0_5 = arith.constant 0 : index
    %c0_6 = arith.constant 0 : index
    %7 = vector.load %arg3[%c0_5, %c0_6] : memref<4x32xbf16, #tpu.memory_space<vmem>>, vector<4x32xbf16>
    %cst = arith.constant dense<0.000000e+00> : vector<16x32xf32>
    %8 = tpu.matmul %6, %7, %cst {dimension_numbers = #tpu.dot_dimension_numbers<[1], [0], [0], [1], [0, 0, 1, 1], [], []>} : vector<16x4xbf16>, vector<4x32xbf16>, vector<16x32xf32> -> vector<16x32xf32>
    %c0_7 = arith.constant 0 : index
    %c0_8 = arith.constant 0 : index
    %9 = vector.load %arg4[%c0_7, %c0_8] : memref<1x32xf32, #tpu.memory_space<vmem>>, vector<1x32xf32>
    %10 = vector.broadcast %9 : vector<1x32xf32> to vector<16x32xf32>
    %11 = arith.addf %8, %10 : vector<16x32xf32>
    %12 = vector.broadcast %3 : vector<16x1xf32> to vector<16x32xf32>
    %13 = arith.mulf %11, %12 : vector<16x32xf32>
    %cst_9 = arith.constant 0.000000e+00 : f32
    %14 = vector.broadcast %cst_9 : f32 to vector<32x32xf32>
    %c0_10 = arith.constant 0 : index
    %c0_11 = arith.constant 0 : index
    %15 = vector.load %arg12[%c0_10, %c0_11] : memref<32x32xf32, #tpu.memory_space<vmem>>, vector<32x32xf32>
    tpu.vector_store %arg12[%c0_10, %c0_11], %14 {strides = array<i32>} : memref<32x32xf32, #tpu.memory_space<vmem>>, vector<32x32xf32>,
    %cst_12 = arith.constant 0.000000e+00 : f32
    %16 = vector.broadcast %cst_12 : f32 to vector<16x32xf32>
    %c8 = arith.constant 8 : index
    %c0_13 = arith.constant 0 : index
    %17 = vector.load %arg12[%c8, %c0_13] : memref<32x32xf32, #tpu.memory_space<vmem>>, vector<16x32xf32>
    tpu.vector_store %arg12[%c8, %c0_13], %13 {strides = array<i32>} : memref<32x32xf32, #tpu.memory_space<vmem>>, vector<16x32xf32>,
    %c6 = arith.constant 6 : index
    %c0_14 = arith.constant 0 : index
    %18 = vector.load %arg12[%c6, %c0_14] : memref<32x32xf32, #tpu.memory_space<vmem>>, vector<16x32xf32>
    %c7 = arith.constant 7 : index
    %c0_15 = arith.constant 0 : index
    %19 = vector.load %arg12[%c7, %c0_15] : memref<32x32xf32, #tpu.memory_space<vmem>>, vector<16x32xf32>
    %c8_16 = arith.constant 8 : index
    %c0_17 = arith.constant 0 : index
    %20 = vector.load %arg12[%c8_16, %c0_17] : memref<32x32xf32, #tpu.memory_space<vmem>>, vector<16x32xf32>
    %c9 = arith.constant 9 : index
    %c0_18 = arith.constant 0 : index
    %21 = vector.load %arg12[%c9, %c0_18] : memref<32x32xf32, #tpu.memory_space<vmem>>, vector<16x32xf32>
    %c10 = arith.constant 10 : index
    %c0_19 = arith.constant 0 : index
    %22 = vector.load %arg12[%c10, %c0_19] : memref<32x32xf32, #tpu.memory_space<vmem>>, vector<16x32xf32>
    %23 = tpu.concatenate %18, %19, %20, %21, %22 in 1 : vector<16x32xf32>, vector<16x32xf32>, vector<16x32xf32>, vector<16x32xf32>, vector<16x32xf32> -> vector<16x160xf32>
    %24 = arith.truncf %23 : vector<16x160xf32> to vector<16x160xbf16>
    %c0_20 = arith.constant 0 : index
    %c0_21 = arith.constant 0 : index
    %c0_22 = arith.constant 0 : index
    %25 = vector.load %arg5[%c0_20, %c0_21, %c0_22] : memref<3x160x64xbf16, #tpu.memory_space<vmem>>, vector<1x160x64xbf16>
    %26 = vector.shape_cast %25 : vector<1x160x64xbf16> to vector<160x64xbf16>
    %cst_23 = arith.constant dense<0.000000e+00> : vector<16x64xf32>
    %27 = tpu.matmul %24, %26, %cst_23 {dimension_numbers = #tpu.dot_dimension_numbers<[1], [0], [0], [1], [0, 0, 1, 1], [], []>} : vector<16x160xbf16>, vector<160x64xbf16>, vector<16x64xf32> -> vector<16x64xf32>
    %c0_24 = arith.constant 0 : index
    %c0_25 = arith.constant 0 : index
    %c0_26 = arith.constant 0 : index
    %28 = vector.load %arg6[%c0_24, %c0_25, %c0_26] : memref<3x1x64xf32, #tpu.memory_space<vmem>>, vector<1x1x64xf32>
    %29 = vector.shape_cast %28 : vector<1x1x64xf32> to vector<1x64xf32>
    %30 = vector.broadcast %29 : vector<1x64xf32> to vector<16x64xf32>
    %31 = arith.addf %27, %30 : vector<16x64xf32>
    %32 = vector.extract_strided_slice %31 {offsets = [0, 0], sizes = [16, 32], strides = [1, 1]} : vector<16x64xf32> to vector<16x32xf32>
    %33 = math.tanh %32 : vector<16x32xf32>
    %34 = vector.extract_strided_slice %31 {offsets = [0, 32], sizes = [16, 32], strides = [1, 1]} : vector<16x64xf32> to vector<16x32xf32>
    %35 = arith.negf %34 : vector<16x32xf32>
    %36 = math.exp %35 : vector<16x32xf32>
    %cst_27 = arith.constant 1.000000e+00 : f32
    %37 = vector.broadcast %cst_27 : f32 to vector<16x32xf32>
    %38 = arith.addf %37, %36 : vector<16x32xf32>
    %39 = arith.divf %37, %38 : vector<16x32xf32>
    %40 = arith.mulf %33, %39 : vector<16x32xf32>
    %41 = arith.truncf %40 : vector<16x32xf32> to vector<16x32xbf16>
    %c0_28 = arith.constant 0 : index
    %c0_29 = arith.constant 0 : index
    %c0_30 = arith.constant 0 : index
    %42 = vector.load %arg7[%c0_28, %c0_29, %c0_30] : memref<3x32x64xbf16, #tpu.memory_space<vmem>>, vector<1x32x64xbf16>
    %43 = vector.shape_cast %42 : vector<1x32x64xbf16> to vector<32x64xbf16>
    %cst_31 = arith.constant dense<0.000000e+00> : vector<16x64xf32>
    %44 = tpu.matmul %41, %43, %cst_31 {dimension_numbers = #tpu.dot_dimension_numbers<[1], [0], [0], [1], [0, 0, 1, 1], [], []>} : vector<16x32xbf16>, vector<32x64xbf16>, vector<16x64xf32> -> vector<16x64xf32>
    %c0_32 = arith.constant 0 : index
    %c0_33 = arith.constant 0 : index
    %c0_34 = arith.constant 0 : index
    %45 = vector.load %arg8[%c0_32, %c0_33, %c0_34] : memref<3x1x64xf32, #tpu.memory_space<vmem>>, vector<1x1x64xf32>
    %46 = vector.shape_cast %45 : vector<1x1x64xf32> to vector<1x64xf32>
    %47 = vector.broadcast %46 : vector<1x64xf32> to vector<16x64xf32>
    %48 = arith.addf %44, %47 : vector<16x64xf32>
    %49 = vector.extract_strided_slice %48 {offsets = [0, 32], sizes = [16, 32], strides = [1, 1]} : vector<16x64xf32> to vector<16x32xf32>
    %50 = arith.addf %16, %49 : vector<16x32xf32>
    %51 = vector.extract_strided_slice %48 {offsets = [0, 0], sizes = [16, 32], strides = [1, 1]} : vector<16x64xf32> to vector<16x32xf32>
    %52 = arith.addf %13, %51 : vector<16x32xf32>
    %53 = vector.broadcast %3 : vector<16x1xf32> to vector<16x32xf32>
    %54 = arith.mulf %52, %53 : vector<16x32xf32>
    %c8_35 = arith.constant 8 : index
    %c0_36 = arith.constant 0 : index
    %55 = vector.load %arg12[%c8_35, %c0_36] : memref<32x32xf32, #tpu.memory_space<vmem>>, vector<16x32xf32>
    tpu.vector_store %arg12[%c8_35, %c0_36], %54 {strides = array<i32>} : memref<32x32xf32, #tpu.memory_space<vmem>>, vector<16x32xf32>,
    %c4 = arith.constant 4 : index
    %c0_37 = arith.constant 0 : index
    %56 = vector.load %arg12[%c4, %c0_37] : memref<32x32xf32, #tpu.memory_space<vmem>>, vector<16x32xf32>
    %c6_38 = arith.constant 6 : index
    %c0_39 = arith.constant 0 : index
    %57 = vector.load %arg12[%c6_38, %c0_39] : memref<32x32xf32, #tpu.memory_space<vmem>>, vector<16x32xf32>
    %c8_40 = arith.constant 8 : index
    %c0_41 = arith.constant 0 : index
    %58 = vector.load %arg12[%c8_40, %c0_41] : memref<32x32xf32, #tpu.memory_space<vmem>>, vector<16x32xf32>
    %c10_42 = arith.constant 10 : index
    %c0_43 = arith.constant 0 : index
    %59 = vector.load %arg12[%c10_42, %c0_43] : memref<32x32xf32, #tpu.memory_space<vmem>>, vector<16x32xf32>
    %c12 = arith.constant 12 : index
    %c0_44 = arith.constant 0 : index
    %60 = vector.load %arg12[%c12, %c0_44] : memref<32x32xf32, #tpu.memory_space<vmem>>, vector<16x32xf32>
    %61 = tpu.concatenate %56, %57, %58, %59, %60 in 1 : vector<16x32xf32>, vector<16x32xf32>, vector<16x32xf32>, vector<16x32xf32>, vector<16x32xf32> -> vector<16x160xf32>
    %62 = arith.truncf %61 : vector<16x160xf32> to vector<16x160xbf16>
    %c1 = arith.constant 1 : index
    %c0_45 = arith.constant 0 : index
    %c0_46 = arith.constant 0 : index
    %63 = vector.load %arg5[%c1, %c0_45, %c0_46] : memref<3x160x64xbf16, #tpu.memory_space<vmem>>, vector<1x160x64xbf16>
    %64 = vector.shape_cast %63 : vector<1x160x64xbf16> to vector<160x64xbf16>
    %cst_47 = arith.constant dense<0.000000e+00> : vector<16x64xf32>
    %65 = tpu.matmul %62, %64, %cst_47 {dimension_numbers = #tpu.dot_dimension_numbers<[1], [0], [0], [1], [0, 0, 1, 1], [], []>} : vector<16x160xbf16>, vector<160x64xbf16>, vector<16x64xf32> -> vector<16x64xf32>
    %c1_48 = arith.constant 1 : index
    %c0_49 = arith.constant 0 : index
    %c0_50 = arith.constant 0 : index
    %66 = vector.load %arg6[%c1_48, %c0_49, %c0_50] : memref<3x1x64xf32, #tpu.memory_space<vmem>>, vector<1x1x64xf32>
    %67 = vector.shape_cast %66 : vector<1x1x64xf32> to vector<1x64xf32>
    %68 = vector.broadcast %67 : vector<1x64xf32> to vector<16x64xf32>
    %69 = arith.addf %65, %68 : vector<16x64xf32>
    %70 = vector.extract_strided_slice %69 {offsets = [0, 0], sizes = [16, 32], strides = [1, 1]} : vector<16x64xf32> to vector<16x32xf32>
    %71 = math.tanh %70 : vector<16x32xf32>
    %72 = vector.extract_strided_slice %69 {offsets = [0, 32], sizes = [16, 32], strides = [1, 1]} : vector<16x64xf32> to vector<16x32xf32>
    %73 = arith.negf %72 : vector<16x32xf32>
    %74 = math.exp %73 : vector<16x32xf32>
    %cst_51 = arith.constant 1.000000e+00 : f32
    %75 = vector.broadcast %cst_51 : f32 to vector<16x32xf32>
    %76 = arith.addf %75, %74 : vector<16x32xf32>
    %77 = arith.divf %75, %76 : vector<16x32xf32>
    %78 = arith.mulf %71, %77 : vector<16x32xf32>
    %79 = arith.truncf %78 : vector<16x32xf32> to vector<16x32xbf16>
    %c1_52 = arith.constant 1 : index
    %c0_53 = arith.constant 0 : index
    %c0_54 = arith.constant 0 : index
    %80 = vector.load %arg7[%c1_52, %c0_53, %c0_54] : memref<3x32x64xbf16, #tpu.memory_space<vmem>>, vector<1x32x64xbf16>
    %81 = vector.shape_cast %80 : vector<1x32x64xbf16> to vector<32x64xbf16>
    %cst_55 = arith.constant dense<0.000000e+00> : vector<16x64xf32>
    %82 = tpu.matmul %79, %81, %cst_55 {dimension_numbers = #tpu.dot_dimension_numbers<[1], [0], [0], [1], [0, 0, 1, 1], [], []>} : vector<16x32xbf16>, vector<32x64xbf16>, vector<16x64xf32> -> vector<16x64xf32>
    %c1_56 = arith.constant 1 : index
    %c0_57 = arith.constant 0 : index
    %c0_58 = arith.constant 0 : index
    %83 = vector.load %arg8[%c1_56, %c0_57, %c0_58] : memref<3x1x64xf32, #tpu.memory_space<vmem>>, vector<1x1x64xf32>
    %84 = vector.shape_cast %83 : vector<1x1x64xf32> to vector<1x64xf32>
    %85 = vector.broadcast %84 : vector<1x64xf32> to vector<16x64xf32>
    %86 = arith.addf %82, %85 : vector<16x64xf32>
    %87 = vector.extract_strided_slice %86 {offsets = [0, 32], sizes = [16, 32], strides = [1, 1]} : vector<16x64xf32> to vector<16x32xf32>
    %88 = arith.addf %50, %87 : vector<16x32xf32>
    %89 = vector.extract_strided_slice %86 {offsets = [0, 0], sizes = [16, 32], strides = [1, 1]} : vector<16x64xf32> to vector<16x32xf32>
    %90 = arith.addf %54, %89 : vector<16x32xf32>
    %91 = vector.broadcast %3 : vector<16x1xf32> to vector<16x32xf32>
    %92 = arith.mulf %90, %91 : vector<16x32xf32>
    %c8_59 = arith.constant 8 : index
    %c0_60 = arith.constant 0 : index
    %93 = vector.load %arg12[%c8_59, %c0_60] : memref<32x32xf32, #tpu.memory_space<vmem>>, vector<16x32xf32>
    tpu.vector_store %arg12[%c8_59, %c0_60], %92 {strides = array<i32>} : memref<32x32xf32, #tpu.memory_space<vmem>>, vector<16x32xf32>,
    %c0_61 = arith.constant 0 : index
    %c0_62 = arith.constant 0 : index
    %94 = vector.load %arg12[%c0_61, %c0_62] : memref<32x32xf32, #tpu.memory_space<vmem>>, vector<16x32xf32>
    %c4_63 = arith.constant 4 : index
    %c0_64 = arith.constant 0 : index
    %95 = vector.load %arg12[%c4_63, %c0_64] : memref<32x32xf32, #tpu.memory_space<vmem>>, vector<16x32xf32>
    %c8_65 = arith.constant 8 : index
    %c0_66 = arith.constant 0 : index
    %96 = vector.load %arg12[%c8_65, %c0_66] : memref<32x32xf32, #tpu.memory_space<vmem>>, vector<16x32xf32>
    %c12_67 = arith.constant 12 : index
    %c0_68 = arith.constant 0 : index
    %97 = vector.load %arg12[%c12_67, %c0_68] : memref<32x32xf32, #tpu.memory_space<vmem>>, vector<16x32xf32>
    %c16 = arith.constant 16 : index
    %c0_69 = arith.constant 0 : index
    %98 = vector.load %arg12[%c16, %c0_69] : memref<32x32xf32, #tpu.memory_space<vmem>>, vector<16x32xf32>
    %99 = tpu.concatenate %94, %95, %96, %97, %98 in 1 : vector<16x32xf32>, vector<16x32xf32>, vector<16x32xf32>, vector<16x32xf32>, vector<16x32xf32> -> vector<16x160xf32>
    %100 = arith.truncf %99 : vector<16x160xf32> to vector<16x160xbf16>
    %c2 = arith.constant 2 : index
    %c0_70 = arith.constant 0 : index
    %c0_71 = arith.constant 0 : index
    %101 = vector.load %arg5[%c2, %c0_70, %c0_71] : memref<3x160x64xbf16, #tpu.memory_space<vmem>>, vector<1x160x64xbf16>
    %102 = vector.shape_cast %101 : vector<1x160x64xbf16> to vector<160x64xbf16>
    %cst_72 = arith.constant dense<0.000000e+00> : vector<16x64xf32>
    %103 = tpu.matmul %100, %102, %cst_72 {dimension_numbers = #tpu.dot_dimension_numbers<[1], [0], [0], [1], [0, 0, 1, 1], [], []>} : vector<16x160xbf16>, vector<160x64xbf16>, vector<16x64xf32> -> vector<16x64xf32>
    %c2_73 = arith.constant 2 : index
    %c0_74 = arith.constant 0 : index
    %c0_75 = arith.constant 0 : index
    %104 = vector.load %arg6[%c2_73, %c0_74, %c0_75] : memref<3x1x64xf32, #tpu.memory_space<vmem>>, vector<1x1x64xf32>
    %105 = vector.shape_cast %104 : vector<1x1x64xf32> to vector<1x64xf32>
    %106 = vector.broadcast %105 : vector<1x64xf32> to vector<16x64xf32>
    %107 = arith.addf %103, %106 : vector<16x64xf32>
    %108 = vector.extract_strided_slice %107 {offsets = [0, 0], sizes = [16, 32], strides = [1, 1]} : vector<16x64xf32> to vector<16x32xf32>
    %109 = math.tanh %108 : vector<16x32xf32>
    %110 = vector.extract_strided_slice %107 {offsets = [0, 32], sizes = [16, 32], strides = [1, 1]} : vector<16x64xf32> to vector<16x32xf32>
    %111 = arith.negf %110 : vector<16x32xf32>
    %112 = math.exp %111 : vector<16x32xf32>
    %cst_76 = arith.constant 1.000000e+00 : f32
    %113 = vector.broadcast %cst_76 : f32 to vector<16x32xf32>
    %114 = arith.addf %113, %112 : vector<16x32xf32>
    %115 = arith.divf %113, %114 : vector<16x32xf32>
    %116 = arith.mulf %109, %115 : vector<16x32xf32>
    %117 = arith.truncf %116 : vector<16x32xf32> to vector<16x32xbf16>
    %c2_77 = arith.constant 2 : index
    %c0_78 = arith.constant 0 : index
    %c0_79 = arith.constant 0 : index
    %118 = vector.load %arg7[%c2_77, %c0_78, %c0_79] : memref<3x32x64xbf16, #tpu.memory_space<vmem>>, vector<1x32x64xbf16>
    %119 = vector.shape_cast %118 : vector<1x32x64xbf16> to vector<32x64xbf16>
    %cst_80 = arith.constant dense<0.000000e+00> : vector<16x64xf32>
    %120 = tpu.matmul %117, %119, %cst_80 {dimension_numbers = #tpu.dot_dimension_numbers<[1], [0], [0], [1], [0, 0, 1, 1], [], []>} : vector<16x32xbf16>, vector<32x64xbf16>, vector<16x64xf32> -> vector<16x64xf32>
    %c2_81 = arith.constant 2 : index
    %c0_82 = arith.constant 0 : index
    %c0_83 = arith.constant 0 : index
    %121 = vector.load %arg8[%c2_81, %c0_82, %c0_83] : memref<3x1x64xf32, #tpu.memory_space<vmem>>, vector<1x1x64xf32>
    %122 = vector.shape_cast %121 : vector<1x1x64xf32> to vector<1x64xf32>
    %123 = vector.broadcast %122 : vector<1x64xf32> to vector<16x64xf32>
    %124 = arith.addf %120, %123 : vector<16x64xf32>
    %125 = vector.extract_strided_slice %124 {offsets = [0, 32], sizes = [16, 32], strides = [1, 1]} : vector<16x64xf32> to vector<16x32xf32>
    %126 = arith.addf %88, %125 : vector<16x32xf32>
    %127 = vector.broadcast %3 : vector<16x1xf32> to vector<16x32xf32>
    %128 = arith.mulf %126, %127 : vector<16x32xf32>
    %129 = arith.truncf %128 : vector<16x32xf32> to vector<16x32xbf16>
    %c0_84 = arith.constant 0 : index
    %c0_85 = arith.constant 0 : index
    %130 = vector.load %arg9[%c0_84, %c0_85] : memref<32x128xbf16, #tpu.memory_space<vmem>>, vector<32x128xbf16>
    %cst_86 = arith.constant dense<0.000000e+00> : vector<16x128xf32>
    %131 = tpu.matmul %129, %130, %cst_86 {dimension_numbers = #tpu.dot_dimension_numbers<[1], [0], [0], [1], [0, 0, 1, 1], [], []>} : vector<16x32xbf16>, vector<32x128xbf16>, vector<16x128xf32> -> vector<16x128xf32>
    %c0_87 = arith.constant 0 : index
    %c0_88 = arith.constant 0 : index
    %132 = vector.load %arg10[%c0_87, %c0_88] : memref<1x128xf32, #tpu.memory_space<vmem>>, vector<1x128xf32>
    %133 = vector.broadcast %132 : vector<1x128xf32> to vector<16x128xf32>
    %134 = arith.addf %131, %133 : vector<16x128xf32>
    %135 = vector.broadcast %3 : vector<16x1xf32> to vector<16x128xf32>
    %136 = arith.mulf %134, %135 : vector<16x128xf32>
    %c0_89 = arith.constant 0 : index
    %c0_90 = arith.constant 0 : index
    %c0_91 = arith.constant 0 : index
    %137 = vector.load %arg11[%c0_89, %c0_90, %c0_91] : memref<1x16x128xf32, #tpu.memory_space<vmem>>, vector<1x16x128xf32>
    %138 = vector.shape_cast %137 : vector<1x16x128xf32> to vector<16x128xf32>
    %139 = vector.shape_cast %136 : vector<16x128xf32> to vector<1x16x128xf32>
    tpu.vector_store %arg11[%c0_89, %c0_90, %c0_91], %139 {strides = array<i32>} : memref<1x16x128xf32, #tpu.memory_space<vmem>>, vector<1x16x128xf32>,
    return
  }
  func.func @transform_0(%arg0: i32) -> (i32, i32, i32) {
    %c0_i32 = arith.constant 0 : i32
    %c0_i32_0 = arith.constant 0 : i32
    %c0_i32_1 = arith.constant 0 : i32
    return %arg0, %c0_i32, %c0_i32_0 : i32, i32, i32
  }
  func.func @transform_1(%arg0: i32) -> (i32, i32, i32) {
    %c0_i32 = arith.constant 0 : i32
    %c0_i32_0 = arith.constant 0 : i32
    %c0_i32_1 = arith.constant 0 : i32
    return %arg0, %c0_i32, %c0_i32_0 : i32, i32, i32
  }
  func.func @transform_2(%arg0: i32) -> (i32, i32) {
    %c0_i32 = arith.constant 0 : i32
    %c0_i32_0 = arith.constant 0 : i32
    %c0_i32_1 = arith.constant 0 : i32
    return %c0_i32, %c0_i32_0 : i32, i32
  }
  func.func @transform_3(%arg0: i32) -> (i32, i32) {
    %c0_i32 = arith.constant 0 : i32
    %c0_i32_0 = arith.constant 0 : i32
    %c0_i32_1 = arith.constant 0 : i32
    return %c0_i32, %c0_i32_0 : i32, i32
  }
  func.func @transform_4(%arg0: i32) -> (i32, i32, i32) {
    %c0_i32 = arith.constant 0 : i32
    %c0_i32_0 = arith.constant 0 : i32
    %c0_i32_1 = arith.constant 0 : i32
    %c0_i32_2 = arith.constant 0 : i32
    return %c0_i32, %c0_i32_0, %c0_i32_1 : i32, i32, i32
  }
  func.func @transform_5(%arg0: i32) -> (i32, i32, i32) {
    %c0_i32 = arith.constant 0 : i32
    %c0_i32_0 = arith.constant 0 : i32
    %c0_i32_1 = arith.constant 0 : i32
    %c0_i32_2 = arith.constant 0 : i32
    return %c0_i32, %c0_i32_0, %c0_i32_1 : i32, i32, i32
  }
  func.func @transform_6(%arg0: i32) -> (i32, i32, i32) {
    %c0_i32 = arith.constant 0 : i32
    %c0_i32_0 = arith.constant 0 : i32
    %c0_i32_1 = arith.constant 0 : i32
    %c0_i32_2 = arith.constant 0 : i32
    return %c0_i32, %c0_i32_0, %c0_i32_1 : i32, i32, i32
  }
  func.func @transform_7(%arg0: i32) -> (i32, i32, i32) {
    %c0_i32 = arith.constant 0 : i32
    %c0_i32_0 = arith.constant 0 : i32
    %c0_i32_1 = arith.constant 0 : i32
    %c0_i32_2 = arith.constant 0 : i32
    return %c0_i32, %c0_i32_0, %c0_i32_1 : i32, i32, i32
  }
  func.func @transform_8(%arg0: i32) -> (i32, i32) {
    %c0_i32 = arith.constant 0 : i32
    %c0_i32_0 = arith.constant 0 : i32
    %c0_i32_1 = arith.constant 0 : i32
    return %c0_i32, %c0_i32_0 : i32, i32
  }
  func.func @transform_9(%arg0: i32) -> (i32, i32) {
    %c0_i32 = arith.constant 0 : i32
    %c0_i32_0 = arith.constant 0 : i32
    %c0_i32_1 = arith.constant 0 : i32
    return %c0_i32, %c0_i32_0 : i32, i32
  }
  func.func @transform_10(%arg0: i32) -> (i32, i32, i32) {
    %c0_i32 = arith.constant 0 : i32
    %c0_i32_0 = arith.constant 0 : i32
    %c0_i32_1 = arith.constant 0 : i32
    return %arg0, %c0_i32, %c0_i32_0 : i32, i32, i32
  }
}

</mosaic_0001>

<llo_original>
// kernel: tpu_custom_call.1
$region0: #{tpu_custom_call.1}
  #allocation0 [shape = 'u32[]', space=smem, size = 0x4, offset = 0x4, fixed_abs, tag = 'smem constant byte address 0x4 - core index']
  #allocation1 [shape = 'u32[144,128]{1,0:T(1,128)}', space=vmem, size = 0x12000, scoped, tag = 'internal scratch']
  #allocation2 [shape = 'f32[32,32]{1,0:T(8,128)}', space=vmem, size = 0x4000, scoped, tag = 'scratch operand']
  %s0 = inlined_call_operand.vmem [shape: f32[2,16,4], index: 0, kind: input, shape index: {}]
  %s1 = inlined_call_operand.vmem [shape: f32[2,16,1], index: 1, kind: input, shape index: {}]
  %s2 = inlined_call_operand.vmem [shape: bf16[4,32], index: 2, kind: input, shape index: {}]
  %s3 = inlined_call_operand.vmem [shape: f32[1,32], index: 3, kind: input, shape index: {}]
  %s4 = inlined_call_operand.vmem [shape: bf16[3,160,64], index: 4, kind: input, shape index: {}]
  %s5 = inlined_call_operand.vmem [shape: f32[3,1,64], index: 5, kind: input, shape index: {}]
  %s6 = inlined_call_operand.vmem [shape: bf16[3,32,64], index: 6, kind: input, shape index: {}]
  %s7 = inlined_call_operand.vmem [shape: f32[3,1,64], index: 7, kind: input, shape index: {}]
  %s8 = inlined_call_operand.vmem [shape: bf16[32,128], index: 8, kind: input, shape index: {}]
  %s9 = inlined_call_operand.vmem [shape: f32[1,128], index: 9, kind: input, shape index: {}]
  %s10 = inlined_call_operand.hbm [shape: f32[2,16,128], index: 10, kind: output, shape index: {}]
  %s11 = sld [smem:[#allocation0]]
  $region73: #{tpu_custom_call.1} parent=0
    _
  %s13 = ssub.s32 1, %s11
  %s14 = scalar_select 0, %s13, %s11
  $region1: #{tpu_custom_call.1} parent=0
    #allocation3 [shape = 'u8[16384]{0}', space=vmem, size = 0x4000, scoped, tag = 'output window, operand 0']
    #allocation4 [shape = 's32[2]{0}', space=sflag, size = 0x8, scoped, tag = 'scoped memory for tpu_custom_call.1']
    %15 = vsyncpa [#allocation4], 0
    %s16 = scalar_lea.sflag [#allocation4], 1
    %17 = vsyncpa %s16, 0
    loop: start=0, step=1, limit=4
    $region2: #{tpu_custom_call.1} parent=1 // loop_pre_header
      _
    $region3: #{tpu_custom_call.1} parent=1 // loop_header
      %s19 = sphi 0, %s23
      %p20 = scmp.ge.s32.totalorder %s19, 4
      %s29 = sphi 0, %s31
      %s32 = sphi 0, %s29
      %s33 = sphi 0, %s32
      %s49 = sphi 0, %s33
      %s55 = sphi 0, %s57
      %s58 = sphi 0, %s55
      %s59 = sphi 0, %s58
      %s75 = sphi 0, %s59
      %s79 = sphi 0, %s79
      %s81 = sphi 0, %s79
      %s82 = sphi 0, %s81
      %s96 = sphi 0, %s82
      %s100 = sphi 0, %s100
      %s102 = sphi 0, %s100
      %s103 = sphi 0, %s102
      %s117 = sphi 0, %s103
      %s121 = sphi 0, %s121
      %s123 = sphi 0, %s121
      %s124 = sphi 0, %s123
      %s138 = sphi 0, %s124
      %s142 = sphi 0, %s142
      %s144 = sphi 0, %s142
      %s145 = sphi 0, %s144
      %s159 = sphi 0, %s145
      %s163 = sphi 0, %s163
      %s165 = sphi 0, %s163
      %s166 = sphi 0, %s165
      %s180 = sphi 0, %s166
      %s184 = sphi 0, %s184
      %s186 = sphi 0, %s184
      %s187 = sphi 0, %s186
      %s201 = sphi 0, %s187
      %s205 = sphi 0, %s205
      %s207 = sphi 0, %s205
      %s208 = sphi 0, %s207
      %s222 = sphi 0, %s208
      %s226 = sphi 0, %s226
      %s228 = sphi 0, %s226
      %s229 = sphi 0, %s228
      %s243 = sphi 0, %s229
      %s249 = sphi 0, %s251
      %s252 = sphi 0, %s249
      %s253 = sphi 0, %s252
      %s269 = sphi 0, %s253
    $region4: #{tpu_custom_call.1} parent=1 // loop_header_branch
      %22 = sbr.rel (%p20) target = $region8
    $region5: #{tpu_custom_call.1} parent=1 // loop_body
      %s24 = ssub.s32 %s19, 1
      %s25 = ssub.s32 %s19, 2
      %s26 = sadd.s32 %s19, 1
      %s27 = ssub.s32 %s19, %s26
      %p28 = scmp.eq.s32.totalorder %s27, 0
      %s30 = sadd.s32 %s29, 1
      %s31 = scalar_select %p28, %s29, %s30
      %p34 = pneg %p28
      %p35 = scmp.eq.s32.totalorder %s19, 1
      %p36 = por %p34, %p35
      %p37 = scmp.ne.s32.totalorder %s29, %s32
      %p38 = scmp.eq.s32.totalorder %s19, 0
      %p39 = por %p37, %p38
      %p40 = scmp.ne.s32.totalorder %s29, %s32
      %p41 = scmp.eq.s32.totalorder %s24, 1
      %p42 = por %p40, %p41
      %p43 = scmp.ne.s32.totalorder %s32, %s33
      %p44 = scmp.eq.s32.totalorder %s24, 0
      %p45 = por %p43, %p44
      %p46 = scmp.ne.s32.totalorder %s32, %s33
      %p47 = scmp.eq.s32.totalorder %s25, 1
      %p48 = por %p46, %p47
      %p50 = scmp.ne.s32.totalorder %s33, %s49
      %p51 = scmp.eq.s32.totalorder %s25, 0
      %p52 = por %p50, %p51
      %s53 = ssub.s32 %s19, %s26
      %p54 = scmp.eq.s32.totalorder %s53, 0
      %s56 = sadd.s32 %s55, 1
      %s57 = scalar_select %p54, %s55, %s56
      %p60 = pneg %p54
      %p61 = scmp.eq.s32.totalorder %s19, 1
      %p62 = por %p60, %p61
      %p63 = scmp.ne.s32.totalorder %s55, %s58
      %p64 = scmp.eq.s32.totalorder %s19, 0
      %p65 = por %p63, %p64
      %p66 = scmp.ne.s32.totalorder %s55, %s58
      %p67 = scmp.eq.s32.totalorder %s24, 1
      %p68 = por %p66, %p67
      %p69 = scmp.ne.s32.totalorder %s58, %s59
      %p70 = scmp.eq.s32.totalorder %s24, 0
      %p71 = por %p69, %p70
      %p72 = scmp.ne.s32.totalorder %s58, %s59
      %p73 = scmp.eq.s32.totalorder %s25, 1
      %p74 = por %p72, %p73
      %p76 = scmp.ne.s32.totalorder %s59, %s75
      %p77 = scmp.eq.s32.totalorder %s25, 0
      %p78 = por %p76, %p77
      %s80 = sadd.s32 %s79, 1
      %p83 = scmp.eq.s32.totalorder %s19, 1
      %p84 = scmp.ne.s32.totalorder %s79, %s81
      %p85 = scmp.eq.s32.totalorder %s19, 0
      %p86 = por %p84, %p85
      %p87 = scmp.ne.s32.totalorder %s79, %s81
      %p88 = scmp.eq.s32.totalorder %s24, 1
      %p89 = por %p87, %p88
      %p90 = scmp.ne.s32.totalorder %s81, %s82
      %p91 = scmp.eq.s32.totalorder %s24, 0
      %p92 = por %p90, %p91
      %p93 = scmp.ne.s32.totalorder %s81, %s82
      %p94 = scmp.eq.s32.totalorder %s25, 1
      %p95 = por %p93, %p94
      %p97 = scmp.ne.s32.totalorder %s82, %s96
      %p98 = scmp.eq.s32.totalorder %s25, 0
      %p99 = por %p97, %p98
      %s101 = sadd.s32 %s100, 1
      %p104 = scmp.eq.s32.totalorder %s19, 1
      %p105 = scmp.ne.s32.totalorder %s100, %s102
      %p106 = scmp.eq.s32.totalorder %s19, 0
      %p107 = por %p105, %p106
      %p108 = scmp.ne.s32.totalorder %s100, %s102
      %p109 = scmp.eq.s32.totalorder %s24, 1
      %p110 = por %p108, %p109
      %p111 = scmp.ne.s32.totalorder %s102, %s103
      %p112 = scmp.eq.s32.totalorder %s24, 0
      %p113 = por %p111, %p112
      %p114 = scmp.ne.s32.totalorder %s102, %s103
      %p115 = scmp.eq.s32.totalorder %s25, 1
      %p116 = por %p114, %p115
      %p118 = scmp.ne.s32.totalorder %s103, %s117
      %p119 = scmp.eq.s32.totalorder %s25, 0
      %p120 = por %p118, %p119
      %s122 = sadd.s32 %s121, 1
      %p125 = scmp.eq.s32.totalorder %s19, 1
      %p126 = scmp.ne.s32.totalorder %s121, %s123
      %p127 = scmp.eq.s32.totalorder %s19, 0
      %p128 = por %p126, %p127
      %p129 = scmp.ne.s32.totalorder %s121, %s123
      %p130 = scmp.eq.s32.totalorder %s24, 1
      %p131 = por %p129, %p130
      %p132 = scmp.ne.s32.totalorder %s123, %s124
      %p133 = scmp.eq.s32.totalorder %s24, 0
      %p134 = por %p132, %p133
      %p135 = scmp.ne.s32.totalorder %s123, %s124
      %p136 = scmp.eq.s32.totalorder %s25, 1
      %p137 = por %p135, %p136
      %p139 = scmp.ne.s32.totalorder %s124, %s138
      %p140 = scmp.eq.s32.totalorder %s25, 0
      %p141 = por %p139, %p140
      %s143 = sadd.s32 %s142, 1
      %p146 = scmp.eq.s32.totalorder %s19, 1
      %p147 = scmp.ne.s32.totalorder %s142, %s144
      %p148 = scmp.eq.s32.totalorder %s19, 0
      %p149 = por %p147, %p148
      %p150 = scmp.ne.s32.totalorder %s142, %s144
      %p151 = scmp.eq.s32.totalorder %s24, 1
      %p152 = por %p150, %p151
      %p153 = scmp.ne.s32.totalorder %s144, %s145
      %p154 = scmp.eq.s32.totalorder %s24, 0
      %p155 = por %p153, %p154
      %p156 = scmp.ne.s32.totalorder %s144, %s145
      %p157 = scmp.eq.s32.totalorder %s25, 1
      %p158 = por %p156, %p157
      %p160 = scmp.ne.s32.totalorder %s145, %s159
      %p161 = scmp.eq.s32.totalorder %s25, 0
      %p162 = por %p160, %p161
      %s164 = sadd.s32 %s163, 1
      %p167 = scmp.eq.s32.totalorder %s19, 1
      %p168 = scmp.ne.s32.totalorder %s163, %s165
      %p169 = scmp.eq.s32.totalorder %s19, 0
      %p170 = por %p168, %p169
      %p171 = scmp.ne.s32.totalorder %s163, %s165
      %p172 = scmp.eq.s32.totalorder %s24, 1
      %p173 = por %p171, %p172
      %p174 = scmp.ne.s32.totalorder %s165, %s166
      %p175 = scmp.eq.s32.totalorder %s24, 0
      %p176 = por %p174, %p175
      %p177 = scmp.ne.s32.totalorder %s165, %s166
      %p178 = scmp.eq.s32.totalorder %s25, 1
      %p179 = por %p177, %p178
      %p181 = scmp.ne.s32.totalorder %s166, %s180
      %p182 = scmp.eq.s32.totalorder %s25, 0
      %p183 = por %p181, %p182
      %s185 = sadd.s32 %s184, 1
      %p188 = scmp.eq.s32.totalorder %s19, 1
      %p189 = scmp.ne.s32.totalorder %s184, %s186
      %p190 = scmp.eq.s32.totalorder %s19, 0
      %p191 = por %p189, %p190
      %p192 = scmp.ne.s32.totalorder %s184, %s186
      %p193 = scmp.eq.s32.totalorder %s24, 1
      %p194 = por %p192, %p193
      %p195 = scmp.ne.s32.totalorder %s186, %s187
      %p196 = scmp.eq.s32.totalorder %s24, 0
      %p197 = por %p195, %p196
      %p198 = scmp.ne.s32.totalorder %s186, %s187
      %p199 = scmp.eq.s32.totalorder %s25, 1
      %p200 = por %p198, %p199
      %p202 = scmp.ne.s32.totalorder %s187, %s201
      %p203 = scmp.eq.s32.totalorder %s25, 0
      %p204 = por %p202, %p203
      %s206 = sadd.s32 %s205, 1
      %p209 = scmp.eq.s32.totalorder %s19, 1
      %p210 = scmp.ne.s32.totalorder %s205, %s207
      %p211 = scmp.eq.s32.totalorder %s19, 0
      %p212 = por %p210, %p211
      %p213 = scmp.ne.s32.totalorder %s205, %s207
      %p214 = scmp.eq.s32.totalorder %s24, 1
      %p215 = por %p213, %p214
      %p216 = scmp.ne.s32.totalorder %s207, %s208
      %p217 = scmp.eq.s32.totalorder %s24, 0
      %p218 = por %p216, %p217
      %p219 = scmp.ne.s32.totalorder %s207, %s208
      %p220 = scmp.eq.s32.totalorder %s25, 1
      %p221 = por %p219, %p220
      %p223 = scmp.ne.s32.totalorder %s208, %s222
      %p224 = scmp.eq.s32.totalorder %s25, 0
      %p225 = por %p223, %p224
      %s227 = sadd.s32 %s226, 1
      %p230 = scmp.eq.s32.totalorder %s19, 1
      %p231 = scmp.ne.s32.totalorder %s226, %s228
      %p232 = scmp.eq.s32.totalorder %s19, 0
      %p233 = por %p231, %p232
      %p234 = scmp.ne.s32.totalorder %s226, %s228
      %p235 = scmp.eq.s32.totalorder %s24, 1
      %p236 = por %p234, %p235
      %p237 = scmp.ne.s32.totalorder %s228, %s229
      %p238 = scmp.eq.s32.totalorder %s24, 0
      %p239 = por %p237, %p238
      %p240 = scmp.ne.s32.totalorder %s228, %s229
      %p241 = scmp.eq.s32.totalorder %s25, 1
      %p242 = por %p240, %p241
      %p244 = scmp.ne.s32.totalorder %s229, %s243
      %p245 = scmp.eq.s32.totalorder %s25, 0
      %p246 = por %p244, %p245
      %s247 = ssub.s32 %s19, %s26
      %p248 = scmp.eq.s32.totalorder %s247, 0
      %s250 = sadd.s32 %s249, 1
      %s251 = scalar_select %p248, %s249, %s250
      %p254 = pneg %p248
      %p255 = scmp.eq.s32.totalorder %s19, 1
      %p256 = por %p254, %p255
      %p257 = scmp.ne.s32.totalorder %s249, %s252
      %p258 = scmp.eq.s32.totalorder %s19, 0
      %p259 = por %p257, %p258
      %p260 = scmp.ne.s32.totalorder %s249, %s252
      %p261 = scmp.eq.s32.totalorder %s24, 1
      %p262 = por %p260, %p261
      %p263 = scmp.ne.s32.totalorder %s252, %s253
      %p264 = scmp.eq.s32.totalorder %s24, 0
      %p265 = por %p263, %p264
      %p266 = scmp.ne.s32.totalorder %s252, %s253
      %p267 = scmp.eq.s32.totalorder %s25, 1
      %p268 = por %p266, %p267
      %p270 = scmp.ne.s32.totalorder %s253, %s269
      %p271 = scmp.eq.s32.totalorder %s25, 0
      %p272 = por %p270, %p271
      %p273 = scmp.le.s32.totalorder 1, %s19
      %p274 = scmp.lt.s32.totalorder %s19, 3
      %p275 = pnand %p273, %p274
      %p276 = pneg %p275
      // Predicated region
      $region9: #{tpu_custom_call.1} parent=5 // pred_check
        _
      $region10: #{tpu_custom_call.1} parent=5 // pred_check_branch
        %278 = sbr.rel (%p275) target = $region12
      $region11: #{tpu_custom_call.1} parent=5 // pred_region
        %s279 = ssub.s32 %s19, 1
        // Predicated region
        $region13: #{tpu_custom_call.1} parent=11 // pred_check
          %p280 = pneg %p92
        $region14: #{tpu_custom_call.1} parent=11 // pred_check_branch
          %282 = sbr.rel (%p280) target = $region16
        $region15: #{tpu_custom_call.1} parent=11 // pred_region
          _
        $region16: #{tpu_custom_call.1} parent=11 // pred_fallthru
          _
        // Predicated region
        $region17: #{tpu_custom_call.1} parent=11 // pred_check
          %p283 = pneg %p113
        $region18: #{tpu_custom_call.1} parent=11 // pred_check_branch
          %285 = sbr.rel (%p283) target = $region20
        $region19: #{tpu_custom_call.1} parent=11 // pred_region
          _
        $region20: #{tpu_custom_call.1} parent=11 // pred_fallthru
          _
        // Predicated region
        $region21: #{tpu_custom_call.1} parent=11 // pred_check
          %p286 = pneg %p134
        $region22: #{tpu_custom_call.1} parent=11 // pred_check_branch
          %288 = sbr.rel (%p286) target = $region24
        $region23: #{tpu_custom_call.1} parent=11 // pred_region
          _
        $region24: #{tpu_custom_call.1} parent=11 // pred_fallthru
          _
        // Predicated region
        $region25: #{tpu_custom_call.1} parent=11 // pred_check
          %p289 = pneg %p155
        $region26: #{tpu_custom_call.1} parent=11 // pred_check_branch
          %291 = sbr.rel (%p289) target = $region28
        $region27: #{tpu_custom_call.1} parent=11 // pred_region
          _
        $region28: #{tpu_custom_call.1} parent=11 // pred_fallthru
          _
        // Predicated region
        $region29: #{tpu_custom_call.1} parent=11 // pred_check
          %p292 = pneg %p176
        $region30: #{tpu_custom_call.1} parent=11 // pred_check_branch
          %294 = sbr.rel (%p292) target = $region32
        $region31: #{tpu_custom_call.1} parent=11 // pred_region
          _
        $region32: #{tpu_custom_call.1} parent=11 // pred_fallthru
          _
        // Predicated region
        $region33: #{tpu_custom_call.1} parent=11 // pred_check
          %p295 = pneg %p197
        $region34: #{tpu_custom_call.1} parent=11 // pred_check_branch
          %297 = sbr.rel (%p295) target = $region36
        $region35: #{tpu_custom_call.1} parent=11 // pred_region
          _
        $region36: #{tpu_custom_call.1} parent=11 // pred_fallthru
          _
        // Predicated region
        $region37: #{tpu_custom_call.1} parent=11 // pred_check
          %p298 = pneg %p218
        $region38: #{tpu_custom_call.1} parent=11 // pred_check_branch
          %300 = sbr.rel (%p298) target = $region40
        $region39: #{tpu_custom_call.1} parent=11 // pred_region
          _
        $region40: #{tpu_custom_call.1} parent=11 // pred_fallthru
          _
        // Predicated region
        $region41: #{tpu_custom_call.1} parent=11 // pred_check
          %p301 = pneg %p239
        $region42: #{tpu_custom_call.1} parent=11 // pred_check_branch
          %303 = sbr.rel (%p301) target = $region44
        $region43: #{tpu_custom_call.1} parent=11 // pred_region
          _
        $region44: #{tpu_custom_call.1} parent=11 // pred_fallthru
          _
      $region12: #{tpu_custom_call.1} parent=5 // pred_fallthru
        _
      %p304 = scmp.lt.s32.totalorder %s19, 2
      // Predicated region
      $region45: #{tpu_custom_call.1} parent=5 // pred_check
        %p305 = pneg %p304
      $region46: #{tpu_custom_call.1} parent=5 // pred_check_branch
        %307 = sbr.rel (%p305) target = $region48
      $region47: #{tpu_custom_call.1} parent=5 // pred_region
        // Predicated region
        $region49: #{tpu_custom_call.1} parent=47 // pred_check
          %p308 = pneg %p39
        $region50: #{tpu_custom_call.1} parent=47 // pred_check_branch
          %310 = sbr.rel (%p308) target = $region52
        $region51: #{tpu_custom_call.1} parent=47 // pred_region
          %p311 = scmp.lt.s32.totalorder %s19, 1
          %s312 = scalar_select %p311, %s19, 1
          %s313 = smul.addr %s312, 2
          %s314 = smul.addr %s313, 8
          %s315 = scalar_lea.vmem %s0, %s314
        $region52: #{tpu_custom_call.1} parent=47 // pred_fallthru
          _
        // Predicated region
        $region53: #{tpu_custom_call.1} parent=47 // pred_check
          %p316 = pneg %p65
        $region54: #{tpu_custom_call.1} parent=47 // pred_check_branch
          %318 = sbr.rel (%p316) target = $region56
        $region55: #{tpu_custom_call.1} parent=47 // pred_region
          %p319 = scmp.lt.s32.totalorder %s19, 1
          %s320 = scalar_select %p319, %s19, 1
          %s321 = smul.addr %s320, 2
          %s322 = smul.addr %s321, 8
          %s323 = scalar_lea.vmem %s1, %s322
        $region56: #{tpu_custom_call.1} parent=47 // pred_fallthru
          _
      $region48: #{tpu_custom_call.1} parent=5 // pred_fallthru
        _
      %p324 = scmp.le.s32.totalorder 1, %s19
      %p325 = scmp.lt.s32.totalorder %s19, 3
      %p326 = pnand %p324, %p325
      %p327 = pneg %p326
      // Predicated region
      $region57: #{tpu_custom_call.1} parent=5 // pred_check
        _
      $region58: #{tpu_custom_call.1} parent=5 // pred_check_branch
        %329 = sbr.rel (%p326) target = $region60
      $region59: #{tpu_custom_call.1} parent=5 // pred_region
        %s330 = ssub.s32 %s19, 1
        %p331 = scmp.lt.s32.totalorder %s24, 1
        %s332 = scalar_select %p331, %s24, 1
        %s333 = smul.addr %s332, 2
        %s334 = smul.addr %s333, 8
        %s335 = scalar_lea.vmem %s0, %s334
        %p336 = pneg %p45
        %p337 = pneg %p42
        %p338 = scmp.lt.s32.totalorder %s24, 1
        %s339 = scalar_select %p338, %s24, 1
        %s340 = smul.addr %s339, 2
        %s341 = smul.addr %s340, 8
        %s342 = scalar_lea.vmem %s1, %s341
        %p343 = pneg %p71
        %p344 = pneg %p68
        %p345 = pneg %p92
        %p346 = pneg %p89
        %p347 = pneg %p113
        %p348 = pneg %p110
        %p349 = pneg %p134
        %p350 = pneg %p131
        %p351 = pneg %p155
        %p352 = pneg %p152
        %p353 = pneg %p176
        %p354 = pneg %p173
        %p355 = pneg %p197
        %p356 = pneg %p194
        %p357 = pneg %p218
        %p358 = pneg %p215
        %p359 = pneg %p239
        %p360 = pneg %p236
        %p361 = pneg %p265
        %p362 = pneg %p262
        %s363 = sand.u32 %s252, 1
        %s364 = scalar_lea.sflag [#allocation4], %s363
        %s365 = sand.u32 %s252, 1
        %s366 = smul.addr %s365, 16
        %s367 = scalar_lea.vmem [#allocation3], %s366
        %p368 = scmp.lt.s32.totalorder %s24, 1
        %s369 = scalar_select %p368, %s24, 1
        %s370 = smul.addr %s369, 2
        %s371 = smul.addr %s370, 8
        %s372 = scalar_lea.vmem %s0, %s371
        %p373 = scmp.lt.s32.totalorder %s24, 1
        %s374 = scalar_select %p373, %s24, 1
        %s375 = smul.addr %s374, 2
        %s376 = smul.addr %s375, 8
        %s377 = scalar_lea.vmem %s1, %s376
        %v379 = vld [vmem:[%s372] sm:$0xff]
        %v380 = vld [vmem:[%s372 + $0x8] sm:$0xff]
        %v381 = vld [vmem:[%s377] sm:$0xff]
        %v382 = vld [vmem:[%s377 + $0x8] sm:$0xff]
        %384 = vset.pattern.permute.xlu0 0
        %385 = vperm.xlu0 %384, %v381
        %v386 = vpop.permute.xlu0 %385
        %389 = vset.pattern.permute.xlu0 0
        %390 = vperm.xlu0 %389, %v382
        %v391 = vpop.permute.xlu0 %390
        %v393 = vmul.f32 %v379, %v386
        %v394 = vmul.f32 %v380, %v391
        %v395 = vpack.c.bf16 %v394, %v393
        %v396 = vld [vmem:[%s2] sm:$0x3]
        %v397 = vld [vmem:[%s3] sm:$0x1]
        %v399 = vlaneseq
        %v400 = vshrl.u32 %v399, 7
        %v401 = vsub.s32 0, %v400
        %v402 = vrot.slane %v397, %v401
        %vm404 = vcmask 31744
        %v406 = vsel %vm404, %v395, 0
        %vm408 = vcmask 1041408
        %v410 = vsel %vm408, %v396, 0
        %412 = vmatprep.subr.bf16.mxu0 0
        %413 = vmatpush1.bf16.msra.mxu0 0
        %414 = vmatprep.subr.bf16.mxu0 0
        %415 = vmatpush1.bf16.msra.mxu0 0
        %416 = vmatprep.subr.bf16.mxu0 0
        %417 = vmatpush1.bf16.msra.mxu0 0
        %418 = vmatprep.subr.bf16.mxu0 0
        %419 = vmatpush1.bf16.msra.mxu0 0
        %420 = vmatprep.subr.bf16.mxu0 0
        %421 = vmatpush1.bf16.msra.mxu0 0
        %422 = vmatprep.subr.bf16.mxu0 0
        %423 = vmatpush1.bf16.msra.mxu0 0
        %424 = vmatprep.subr.bf16.mxu0 0
        %425 = vmatpush1.bf16.msra.mxu0 0
        %426 = vmatprep.subr.bf16.mxu0 0
        %427 = vmatpush1.bf16.msra.mxu0 %v410
        %428 = vmatprep.subr.bf16.mxu0 0
        %429 = vmatpush2.bf16.msra.mxu0 0
        %430 = vmatprep.subr.bf16.mxu0 0
        %431 = vmatpush2.bf16.msra.mxu0 0
        %432 = vmatprep.subr.bf16.mxu0 0
        %433 = vmatpush2.bf16.msra.mxu0 0
        %434 = vmatprep.subr.bf16.mxu0 0
        %435 = vmatpush2.bf16.msra.mxu0 0
        %436 = vmatprep.subr.bf16.mxu0 0
        %437 = vmatpush2.bf16.msra.mxu0 0
        %438 = vmatprep.subr.bf16.mxu0 0
        %439 = vmatpush2.bf16.msra.mxu0 0
        %440 = vmatprep.subr.bf16.mxu0 0
        %441 = vmatpush2.bf16.msra.mxu0 0
        %442 = vmatprep.subr.bf16.mxu0 0
        %443 = vmatpush2.bf16.msra.mxu0 0
        %444 = vmatprep.mubr.bf16.mxu0 0
        %445 = vmatmul.mubr.bf16.gmra.mxu0 %v406
        %v446 = vpop.f32.mrf.mxu0
        %v447 = vadd.f32 %v402, %v446
        %v448 = vpop.f32.mrf.mxu0
        %v449 = vpop.f32.mrf.mxu0
        %v450 = vadd.f32 %v402, %v449
        %v451 = vpop.f32.mrf.mxu0
        %452 = vdwg.mxu0
        %v453 = vmul.f32 %v447, %v386
        %v454 = vmul.f32 %v450, %v391
        %vm455 = vcmask 261120
        %456 = vst.msk [vmem:[#allocation2] sm:$0xff] %vm455, 0.0
        %457 = vst.msk [vmem:[#allocation2 + $0x8] sm:$0xff] %vm455, 0.0
        %458 = vst.msk [vmem:[#allocation2 + $0x10] sm:$0xff] %vm455, 0.0
        %459 = vst.msk [vmem:[#allocation2 + $0x18] sm:$0xff] %vm455, 0.0
        %460 = vst.msk [vmem:[#allocation2 + $0x8] sm:$0xff] %vm455, %v453
        %461 = vst.msk [vmem:[#allocation2 + $0x10] sm:$0xff] %vm455, %v454
        %v462 = vld [vmem:[#allocation2 + $0x6] sm:$0xff]
        %v463 = vld [vmem:[#allocation2 + $0xe] sm:$0xff]
        %v464 = vld [vmem:[#allocation2 + $0x7] sm:$0xff]
        %v465 = vld [vmem:[#allocation2 + $0xf] sm:$0xff]
        %v466 = vld [vmem:[#allocation2 + $0x8] sm:$0xff]
        %v467 = vld [vmem:[#allocation2 + $0x10] sm:$0xff]
        %v468 = vld [vmem:[#allocation2 + $0x9] sm:$0xff]
        %v469 = vld [vmem:[#allocation2 + $0x11] sm:$0xff]
        %v470 = vld [vmem:[#allocation2 + $0xa] sm:$0xff]
        %v471 = vld [vmem:[#allocation2 + $0x12] sm:$0xff]
        %474 = vrot.lane.b32.xlu0 %v464, 32
        %v475 = vpop.permute.xlu0 %474
        %476 = vrot.lane.b32.xlu0 %v465, 32
        %v477 = vpop.permute.xlu0 %476
        %482 = vrot.lane.b32.xlu0 %v466, 64
        %v483 = vpop.permute.xlu0 %482
        %484 = vrot.lane.b32.xlu0 %v467, 64
        %v485 = vpop.permute.xlu0 %484
        %490 = vrot.lane.b32.xlu0 %v468, 96
        %v491 = vpop.permute.xlu0 %490
        %492 = vrot.lane.b32.xlu0 %v469, 96
        %v493 = vpop.permute.xlu0 %492
        %v496 = vsel %vm455, %v462, %v475
        %v497 = vsel %vm455, %v463, %v477
        %vm498 = vcmask 523264
        %v499 = vsel %vm498, %v496, %v483
        %v500 = vsel %vm498, %v497, %v485
        %vm501 = vcmask 785408
        %v502 = vsel %vm501, %v499, %v491
        %v503 = vsel %vm501, %v500, %v493
        %v504 = vpack.c.bf16 %v503, %v502
        %v505 = vpack.c.bf16 %v471, %v470
        %v506 = vld [vmem:[%s4] sm:$0xf]
        %v507 = vld [vmem:[%s4 + $0x4] sm:$0xf]
        %v508 = vld [vmem:[%s4 + $0x8] sm:$0xf]
        %v509 = vld [vmem:[%s4 + $0xc] sm:$0xf]
        %v510 = vld [vmem:[%s4 + $0x10] sm:$0xf]
        %v511 = vld [vmem:[%s4 + $0x14] sm:$0xf]
        %v512 = vld [vmem:[%s4 + $0x18] sm:$0xf]
        %v513 = vld [vmem:[%s4 + $0x1c] sm:$0xf]
        %v514 = vld [vmem:[%s4 + $0x20] sm:$0xf]
        %v515 = vld [vmem:[%s4 + $0x24] sm:$0xf]
        %v516 = vld [vmem:[%s4 + $0x28] sm:$0xf]
        %v517 = vld [vmem:[%s4 + $0x2c] sm:$0xf]
        %v518 = vld [vmem:[%s4 + $0x30] sm:$0xf]
        %v519 = vld [vmem:[%s4 + $0x34] sm:$0xf]
        %v520 = vld [vmem:[%s4 + $0x38] sm:$0xf]
        %v521 = vld [vmem:[%s4 + $0x3c] sm:$0xf]
        %v522 = vld [vmem:[%s4 + $0x40] sm:$0xf]
        %v523 = vld [vmem:[%s4 + $0x44] sm:$0xf]
        %v524 = vld [vmem:[%s4 + $0x48] sm:$0xf]
        %v525 = vld [vmem:[%s4 + $0x4c] sm:$0xf]
        %v526 = vld [vmem:[%s5] sm:$0x1]
        %v528 = vlaneseq
        %v529 = vshrl.u32 %v528, 7
        %v530 = vsub.s32 0, %v529
        %v531 = vrot.slane %v526, %v530
        %v553 = vunpack.c.l.b16 %v506
        %v554 = vunpack.c.l.b16 %v507
        %v555 = vunpack.c.l.b16 %v508
        %v556 = vunpack.c.l.b16 %v509
        %v557 = vunpack.c.l.b16 %v510
        %v558 = vunpack.c.l.b16 %v511
        %v559 = vunpack.c.l.b16 %v512
        %v560 = vunpack.c.l.b16 %v513
        %v561 = vunpack.c.l.b16 %v514
        %v562 = vunpack.c.l.b16 %v515
        %v563 = vunpack.c.l.b16 %v516
        %v564 = vunpack.c.l.b16 %v517
        %v565 = vunpack.c.l.b16 %v518
        %v566 = vunpack.c.l.b16 %v519
        %v567 = vunpack.c.l.b16 %v520
        %v568 = vunpack.c.l.b16 %v521
        %v569 = vunpack.c.l.b16 %v522
        %v570 = vunpack.c.l.b16 %v523
        %v571 = vunpack.c.l.b16 %v524
        %v572 = vunpack.c.l.b16 %v525
        %v573 = vpack.c.b16 %v554, %v553
        %v574 = vpack.c.b16 %v556, %v555
        %v575 = vpack.c.b16 %v558, %v557
        %v576 = vpack.c.b16 %v560, %v559
        %v577 = vpack.c.b16 %v562, %v561
        %v578 = vpack.c.b16 %v564, %v563
        %v579 = vpack.c.b16 %v566, %v565
        %v580 = vpack.c.b16 %v568, %v567
        %v581 = vpack.c.b16 %v570, %v569
        %v582 = vpack.c.b16 %v572, %v571
        %v594 = vsel %vm455, %v505, 0
        %596 = vmatprep.subr.bf16.mxu0 0
        %597 = vmatpush1.bf16.msra.mxu0 %v580
        %598 = vmatprep.subr.bf16.mxu0 0
        %599 = vmatpush1.bf16.msra.mxu0 %v579
        %600 = vmatprep.subr.bf16.mxu0 0
        %601 = vmatpush1.bf16.msra.mxu0 %v578
        %602 = vmatprep.subr.bf16.mxu0 0
        %603 = vmatpush1.bf16.msra.mxu0 %v577
        %604 = vmatprep.subr.bf16.mxu0 0
        %605 = vmatpush1.bf16.msra.mxu0 %v576
        %606 = vmatprep.subr.bf16.mxu0 0
        %607 = vmatpush1.bf16.msra.mxu0 %v575
        %608 = vmatprep.subr.bf16.mxu0 0
        %609 = vmatpush1.bf16.msra.mxu0 %v574
        %610 = vmatprep.subr.bf16.mxu0 0
        %611 = vmatpush1.bf16.msra.mxu0 %v573
        %612 = vmatprep.subr.bf16.mxu0 0
        %613 = vmatpush2.bf16.msra.mxu0 0
        %614 = vmatprep.subr.bf16.mxu0 0
        %615 = vmatpush2.bf16.msra.mxu0 0
        %616 = vmatprep.subr.bf16.mxu0 0
        %617 = vmatpush2.bf16.msra.mxu0 0
        %618 = vmatprep.subr.bf16.mxu0 0
        %619 = vmatpush2.bf16.msra.mxu0 0
        %620 = vmatprep.subr.bf16.mxu0 0
        %621 = vmatpush2.bf16.msra.mxu0 0
        %622 = vmatprep.subr.bf16.mxu0 0
        %623 = vmatpush2.bf16.msra.mxu0 0
        %624 = vmatprep.subr.bf16.mxu0 0
        %625 = vmatpush2.bf16.msra.mxu0 %v582
        %626 = vmatprep.subr.bf16.mxu0 0
        %627 = vmatpush2.bf16.msra.mxu0 %v581
        %628 = vmatprep.mubr.bf16.mxu0 %v594
        %629 = vmatmul.mubr.bf16.gmra.mxu0 %v504
        %v630 = vpop.f32.mrf.mxu0
        %v631 = vadd.f32 %v531, %v630
        %v632 = vpop.f32.mrf.mxu0
        %v633 = vpop.f32.mrf.mxu0
        %v634 = vadd.f32 %v531, %v633
        %v635 = vpop.f32.mrf.mxu0
        %636 = vdwg.mxu0
        %v637 = vtanh.pop %v631
        %v638 = vtanh.pop %v634
        %v639 = vxor.u32 %v631, 2147483648
        %v640 = vxor.u32 %v634, 2147483648
        %v641 = vmul.f32 %v639, 1.442695
        %v642 = vpow.pop %v641
        %v643 = vmul.f32 %v640, 1.442695
        %v644 = vpow.pop %v643
        %v645 = vadd.f32 %v642, 1.0
        %v646 = vadd.f32 %v644, 1.0
        %v647 = vrcp.pop %v645
        %v648 = vmul.f32 1.0, %v647
        %v649 = vrcp.pop %v646
        %v650 = vmul.f32 1.0, %v649
        %653 = vrot.lane.b32.xlu0 %v648, 96
        %v654 = vpop.permute.xlu0 %653
        %655 = vrot.lane.b32.xlu0 %v650, 96
        %v656 = vpop.permute.xlu0 %655
        %v659 = vmul.f32 %v637, %v654
        %v660 = vmul.f32 %v638, %v656
        %v661 = vpack.c.bf16 %v660, %v659
        %v662 = vld [vmem:[%s6] sm:$0xf]
        %v663 = vld [vmem:[%s6 + $0x4] sm:$0xf]
        %v664 = vld [vmem:[%s6 + $0x8] sm:$0xf]
        %v665 = vld [vmem:[%s6 + $0xc] sm:$0xf]
        %v666 = vld [vmem:[%s7] sm:$0x1]
        %v668 = vlaneseq
        %v669 = vshrl.u32 %v668, 7
        %v670 = vsub.s32 0, %v669
        %v671 = vrot.slane %v666, %v670
        %v677 = vunpack.c.l.b16 %v662
        %v678 = vunpack.c.l.b16 %v663
        %v679 = vunpack.c.l.b16 %v664
        %v680 = vunpack.c.l.b16 %v665
        %v681 = vpack.c.b16 %v678, %v677
        %v682 = vpack.c.b16 %v680, %v679
        %v686 = vsel %vm455, %v661, 0
        %688 = vmatprep.subr.bf16.mxu0 0
        %689 = vmatpush1.bf16.msra.mxu0 0
        %690 = vmatprep.subr.bf16.mxu0 0
        %691 = vmatpush1.bf16.msra.mxu0 0
        %692 = vmatprep.subr.bf16.mxu0 0
        %693 = vmatpush1.bf16.msra.mxu0 0
        %694 = vmatprep.subr.bf16.mxu0 0
        %695 = vmatpush1.bf16.msra.mxu0 0
        %696 = vmatprep.subr.bf16.mxu0 0
        %697 = vmatpush1.bf16.msra.mxu0 0
        %698 = vmatprep.subr.bf16.mxu0 0
        %699 = vmatpush1.bf16.msra.mxu0 0
        %700 = vmatprep.subr.bf16.mxu0 0
        %701 = vmatpush1.bf16.msra.mxu0 %v682
        %702 = vmatprep.subr.bf16.mxu0 0
        %703 = vmatpush1.bf16.msra.mxu0 %v681
        %704 = vmatprep.subr.bf16.mxu0 0
        %705 = vmatpush2.bf16.msra.mxu0 0
        %706 = vmatprep.subr.bf16.mxu0 0
        %707 = vmatpush2.bf16.msra.mxu0 0
        %708 = vmatprep.subr.bf16.mxu0 0
        %709 = vmatpush2.bf16.msra.mxu0 0
        %710 = vmatprep.subr.bf16.mxu0 0
        %711 = vmatpush2.bf16.msra.mxu0 0
        %712 = vmatprep.subr.bf16.mxu0 0
        %713 = vmatpush2.bf16.msra.mxu0 0
        %714 = vmatprep.subr.bf16.mxu0 0
        %715 = vmatpush2.bf16.msra.mxu0 0
        %716 = vmatprep.subr.bf16.mxu0 0
        %717 = vmatpush2.bf16.msra.mxu0 0
        %718 = vmatprep.subr.bf16.mxu0 0
        %719 = vmatpush2.bf16.msra.mxu0 0
        %720 = vmatprep.mubr.bf16.mxu0 0
        %721 = vmatmul.mubr.bf16.gmra.mxu0 %v686
        %v722 = vpop.f32.mrf.mxu0
        %v723 = vadd.f32 %v671, %v722
        %v724 = vpop.f32.mrf.mxu0
        %v725 = vpop.f32.mrf.mxu0
        %v726 = vadd.f32 %v671, %v725
        %v727 = vpop.f32.mrf.mxu0
        %728 = vdwg.mxu0
        %v729 = vadd.f32 %v723, 0.0
        %v730 = vadd.f32 %v726, 0.0
        %v731 = vadd.f32 %v453, %v723
        %v732 = vadd.f32 %v454, %v726
        %v733 = vmul.f32 %v731, %v386
        %v734 = vmul.f32 %v732, %v391
        %735 = vst.msk [vmem:[#allocation2 + $0x8] sm:$0xff] %vm455, %v733
        %736 = vst.msk [vmem:[#allocation2 + $0x10] sm:$0xff] %vm455, %v734
        %v737 = vld [vmem:[#allocation2 + $0x4] sm:$0xff]
        %v738 = vld [vmem:[#allocation2 + $0xc] sm:$0xff]
        %v739 = vld [vmem:[#allocation2 + $0x6] sm:$0xff]
        %v740 = vld [vmem:[#allocation2 + $0xe] sm:$0xff]
        %v741 = vld [vmem:[#allocation2 + $0x8] sm:$0xff]
        %v742 = vld [vmem:[#allocation2 + $0x10] sm:$0xff]
        %v743 = vld [vmem:[#allocation2 + $0xa] sm:$0xff]
        %v744 = vld [vmem:[#allocation2 + $0x12] sm:$0xff]
        %v745 = vld [vmem:[#allocation2 + $0x14] sm:$0xff]
        %748 = vrot.lane.b32.xlu0 %v739, 32
        %v749 = vpop.permute.xlu0 %748
        %750 = vrot.lane.b32.xlu0 %v740, 32
        %v751 = vpop.permute.xlu0 %750
        %756 = vrot.lane.b32.xlu0 %v741, 64
        %v757 = vpop.permute.xlu0 %756
        %758 = vrot.lane.b32.xlu0 %v742, 64
        %v759 = vpop.permute.xlu0 %758
        %764 = vrot.lane.b32.xlu0 %v743, 96
        %v765 = vpop.permute.xlu0 %764
        %766 = vrot.lane.b32.xlu0 %v744, 96
        %v767 = vpop.permute.xlu0 %766
        %v770 = vsel %vm455, %v737, %v749
        %v771 = vsel %vm455, %v738, %v751
        %v772 = vsel %vm498, %v770, %v757
        %v773 = vsel %vm498, %v771, %v759
        %v774 = vsel %vm501, %v772, %v765
        %v775 = vsel %vm501, %v773, %v767
        %v776 = vpack.c.bf16 %v775, %v774
        %v777 = vpack.c.bf16 %v745, %v738
        %s778 = scalar_lea.vmem %s4, 80
        %v779 = vld [vmem:[%s778] sm:$0xf]
        %v780 = vld [vmem:[%s778 + $0x4] sm:$0xf]
        %v781 = vld [vmem:[%s778 + $0x8] sm:$0xf]
        %v782 = vld [vmem:[%s778 + $0xc] sm:$0xf]
        %v783 = vld [vmem:[%s778 + $0x10] sm:$0xf]
        %v784 = vld [vmem:[%s778 + $0x14] sm:$0xf]
        %v785 = vld [vmem:[%s778 + $0x18] sm:$0xf]
        %v786 = vld [vmem:[%s778 + $0x1c] sm:$0xf]
        %v787 = vld [vmem:[%s778 + $0x20] sm:$0xf]
        %v788 = vld [vmem:[%s778 + $0x24] sm:$0xf]
        %v789 = vld [vmem:[%s778 + $0x28] sm:$0xf]
        %v790 = vld [vmem:[%s778 + $0x2c] sm:$0xf]
        %v791 = vld [vmem:[%s778 + $0x30] sm:$0xf]
        %v792 = vld [vmem:[%s778 + $0x34] sm:$0xf]
        %v793 = vld [vmem:[%s778 + $0x38] sm:$0xf]
        %v794 = vld [vmem:[%s778 + $0x3c] sm:$0xf]
        %v795 = vld [vmem:[%s778 + $0x40] sm:$0xf]
        %v796 = vld [vmem:[%s778 + $0x44] sm:$0xf]
        %v797 = vld [vmem:[%s778 + $0x48] sm:$0xf]
        %v798 = vld [vmem:[%s778 + $0x4c] sm:$0xf]
        %s799 = scalar_lea.vmem %s5, 1
        %v800 = vld [vmem:[%s799] sm:$0x1]
        %v802 = vlaneseq
        %v803 = vshrl.u32 %v802, 7
        %v804 = vsub.s32 0, %v803
        %v805 = vrot.slane %v800, %v804
        %v827 = vunpack.c.l.b16 %v779
        %v828 = vunpack.c.l.b16 %v780
        %v829 = vunpack.c.l.b16 %v781
        %v830 = vunpack.c.l.b16 %v782
        %v831 = vunpack.c.l.b16 %v783
        %v832 = vunpack.c.l.b16 %v784
        %v833 = vunpack.c.l.b16 %v785
        %v834 = vunpack.c.l.b16 %v786
        %v835 = vunpack.c.l.b16 %v787
        %v836 = vunpack.c.l.b16 %v788
        %v837 = vunpack.c.l.b16 %v789
        %v838 = vunpack.c.l.b16 %v790
        %v839 = vunpack.c.l.b16 %v791
        %v840 = vunpack.c.l.b16 %v792
        %v841 = vunpack.c.l.b16 %v793
        %v842 = vunpack.c.l.b16 %v794
        %v843 = vunpack.c.l.b16 %v795
        %v844 = vunpack.c.l.b16 %v796
        %v845 = vunpack.c.l.b16 %v797
        %v846 = vunpack.c.l.b16 %v798
        %v847 = vpack.c.b16 %v828, %v827
        %v848 = vpack.c.b16 %v830, %v829
        %v849 = vpack.c.b16 %v832, %v831
        %v850 = vpack.c.b16 %v834, %v833
        %v851 = vpack.c.b16 %v836, %v835
        %v852 = vpack.c.b16 %v838, %v837
        %v853 = vpack.c.b16 %v840, %v839
        %v854 = vpack.c.b16 %v842, %v841
        %v855 = vpack.c.b16 %v844, %v843
        %v856 = vpack.c.b16 %v846, %v845
        %v868 = vsel %vm455, %v777, 0
        %870 = vmatprep.subr.bf16.mxu0 0
        %871 = vmatpush1.bf16.msra.mxu0 %v854
        %872 = vmatprep.subr.bf16.mxu0 0
        %873 = vmatpush1.bf16.msra.mxu0 %v853
        %874 = vmatprep.subr.bf16.mxu0 0
        %875 = vmatpush1.bf16.msra.mxu0 %v852
        %876 = vmatprep.subr.bf16.mxu0 0
        %877 = vmatpush1.bf16.msra.mxu0 %v851
        %878 = vmatprep.subr.bf16.mxu0 0
        %879 = vmatpush1.bf16.msra.mxu0 %v850
        %880 = vmatprep.subr.bf16.mxu0 0
        %881 = vmatpush1.bf16.msra.mxu0 %v849
        %882 = vmatprep.subr.bf16.mxu0 0
        %883 = vmatpush1.bf16.msra.mxu0 %v848
        %884 = vmatprep.subr.bf16.mxu0 0
        %885 = vmatpush1.bf16.msra.mxu0 %v847
        %886 = vmatprep.subr.bf16.mxu0 0
        %887 = vmatpush2.bf16.msra.mxu0 0
        %888 = vmatprep.subr.bf16.mxu0 0
        %889 = vmatpush2.bf16.msra.mxu0 0
        %890 = vmatprep.subr.bf16.mxu0 0
        %891 = vmatpush2.bf16.msra.mxu0 0
        %892 = vmatprep.subr.bf16.mxu0 0
        %893 = vmatpush2.bf16.msra.mxu0 0
        %894 = vmatprep.subr.bf16.mxu0 0
        %895 = vmatpush2.bf16.msra.mxu0 0
        %896 = vmatprep.subr.bf16.mxu0 0
        %897 = vmatpush2.bf16.msra.mxu0 0
        %898 = vmatprep.subr.bf16.mxu0 0
        %899 = vmatpush2.bf16.msra.mxu0 %v856
        %900 = vmatprep.subr.bf16.mxu0 0
        %901 = vmatpush2.bf16.msra.mxu0 %v855
        %902 = vmatprep.mubr.bf16.mxu0 %v868
        %903 = vmatmul.mubr.bf16.gmra.mxu0 %v776
        %v904 = vpop.f32.mrf.mxu0
        %v905 = vadd.f32 %v805, %v904
        %v906 = vpop.f32.mrf.mxu0
        %v907 = vpop.f32.mrf.mxu0
        %v908 = vadd.f32 %v805, %v907
        %v909 = vpop.f32.mrf.mxu0
        %910 = vdwg.mxu0
        %v911 = vtanh.pop %v905
        %v912 = vtanh.pop %v908
        %v913 = vxor.u32 %v905, 2147483648
        %v914 = vxor.u32 %v908, 2147483648
        %v915 = vmul.f32 %v913, 1.442695
        %v916 = vpow.pop %v915
        %v917 = vmul.f32 %v914, 1.442695
        %v918 = vpow.pop %v917
        %v919 = vadd.f32 %v916, 1.0
        %v920 = vadd.f32 %v918, 1.0
        %v921 = vrcp.pop %v919
        %v922 = vmul.f32 1.0, %v921
        %v923 = vrcp.pop %v920
        %v924 = vmul.f32 1.0, %v923
        %927 = vrot.lane.b32.xlu0 %v922, 96
        %v928 = vpop.permute.xlu0 %927
        %929 = vrot.lane.b32.xlu0 %v924, 96
        %v930 = vpop.permute.xlu0 %929
        %v933 = vmul.f32 %v911, %v928
        %v934 = vmul.f32 %v912, %v930
        %v935 = vpack.c.bf16 %v934, %v933
        %s936 = scalar_lea.vmem %s6, 16
        %v937 = vld [vmem:[%s936] sm:$0xf]
        %v938 = vld [vmem:[%s936 + $0x4] sm:$0xf]
        %v939 = vld [vmem:[%s936 + $0x8] sm:$0xf]
        %v940 = vld [vmem:[%s936 + $0xc] sm:$0xf]
        %s941 = scalar_lea.vmem %s7, 1
        %v942 = vld [vmem:[%s941] sm:$0x1]
        %v944 = vlaneseq
        %v945 = vshrl.u32 %v944, 7
        %v946 = vsub.s32 0, %v945
        %v947 = vrot.slane %v942, %v946
        %v953 = vunpack.c.l.b16 %v937
        %v954 = vunpack.c.l.b16 %v938
        %v955 = vunpack.c.l.b16 %v939
        %v956 = vunpack.c.l.b16 %v940
        %v957 = vpack.c.b16 %v954, %v953
        %v958 = vpack.c.b16 %v956, %v955
        %v962 = vsel %vm455, %v935, 0
        %964 = vmatprep.subr.bf16.mxu0 0
        %965 = vmatpush1.bf16.msra.mxu0 0
        %966 = vmatprep.subr.bf16.mxu0 0
        %967 = vmatpush1.bf16.msra.mxu0 0
        %968 = vmatprep.subr.bf16.mxu0 0
        %969 = vmatpush1.bf16.msra.mxu0 0
        %970 = vmatprep.subr.bf16.mxu0 0
        %971 = vmatpush1.bf16.msra.mxu0 0
        %972 = vmatprep.subr.bf16.mxu0 0
        %973 = vmatpush1.bf16.msra.mxu0 0
        %974 = vmatprep.subr.bf16.mxu0 0
        %975 = vmatpush1.bf16.msra.mxu0 0
        %976 = vmatprep.subr.bf16.mxu0 0
        %977 = vmatpush1.bf16.msra.mxu0 %v958
        %978 = vmatprep.subr.bf16.mxu0 0
        %979 = vmatpush1.bf16.msra.mxu0 %v957
        %980 = vmatprep.subr.bf16.mxu0 0
        %981 = vmatpush2.bf16.msra.mxu0 0
        %982 = vmatprep.subr.bf16.mxu0 0
        %983 = vmatpush2.bf16.msra.mxu0 0
        %984 = vmatprep.subr.bf16.mxu0 0
        %985 = vmatpush2.bf16.msra.mxu0 0
        %986 = vmatprep.subr.bf16.mxu0 0
        %987 = vmatpush2.bf16.msra.mxu0 0
        %988 = vmatprep.subr.bf16.mxu0 0
        %989 = vmatpush2.bf16.msra.mxu0 0
        %990 = vmatprep.subr.bf16.mxu0 0
        %991 = vmatpush2.bf16.msra.mxu0 0
        %992 = vmatprep.subr.bf16.mxu0 0
        %993 = vmatpush2.bf16.msra.mxu0 0
        %994 = vmatprep.subr.bf16.mxu0 0
        %995 = vmatpush2.bf16.msra.mxu0 0
        %996 = vmatprep.mubr.bf16.mxu0 0
        %997 = vmatmul.mubr.bf16.gmra.mxu0 %v962
        %v998 = vpop.f32.mrf.mxu0
        %v999 = vadd.f32 %v947, %v998
        %v1000 = vpop.f32.mrf.mxu0
        %v1001 = vpop.f32.mrf.mxu0
        %v1002 = vadd.f32 %v947, %v1001
        %v1003 = vpop.f32.mrf.mxu0
        %1004 = vdwg.mxu0
        %v1005 = vadd.f32 %v729, %v999
        %v1006 = vadd.f32 %v730, %v1002
        %v1007 = vadd.f32 %v733, %v999
        %v1008 = vadd.f32 %v734, %v1002
        %v1009 = vmul.f32 %v1007, %v386
        %v1010 = vmul.f32 %v1008, %v391
        %1011 = vst.msk [vmem:[#allocation2 + $0x8] sm:$0xff] %vm455, %v1009
        %1012 = vst.msk [vmem:[#allocation2 + $0x10] sm:$0xff] %vm455, %v1010
        %v1013 = vld [vmem:[#allocation2] sm:$0xff]
        %v1014 = vld [vmem:[#allocation2 + $0x8] sm:$0xff]
        %v1015 = vld [vmem:[#allocation2 + $0x4] sm:$0xff]
        %v1016 = vld [vmem:[#allocation2 + $0xc] sm:$0xff]
        %v1017 = vld [vmem:[#allocation2 + $0x10] sm:$0xff]
        %v1018 = vld [vmem:[#allocation2 + $0x14] sm:$0xff]
        %v1019 = vld [vmem:[#allocation2 + $0x18] sm:$0xff]
        %1022 = vrot.lane.b32.xlu0 %v1015, 32
        %v1023 = vpop.permute.xlu0 %1022
        %1024 = vrot.lane.b32.xlu0 %v1016, 32
        %v1025 = vpop.permute.xlu0 %1024
        %1030 = vrot.lane.b32.xlu0 %v1014, 64
        %v1031 = vpop.permute.xlu0 %1030
        %1032 = vrot.lane.b32.xlu0 %v1017, 64
        %v1033 = vpop.permute.xlu0 %1032
        %1037 = vrot.lane.b32.xlu0 %v1016, 96
        %v1038 = vpop.permute.xlu0 %1037
        %1039 = vrot.lane.b32.xlu0 %v1018, 96
        %v1040 = vpop.permute.xlu0 %1039
        %v1043 = vsel %vm455, %v1013, %v1023
        %v1044 = vsel %vm455, %v1014, %v1025
        %v1045 = vsel %vm498, %v1043, %v1031
        %v1046 = vsel %vm498, %v1044, %v1033
        %v1047 = vsel %vm501, %v1045, %v1038
        %v1048 = vsel %vm501, %v1046, %v1040
        %v1049 = vpack.c.bf16 %v1048, %v1047
        %v1050 = vpack.c.bf16 %v1019, %v1017
        %s1051 = scalar_lea.vmem %s4, 160
        %v1052 = vld [vmem:[%s1051] sm:$0xf]
        %v1053 = vld [vmem:[%s1051 + $0x4] sm:$0xf]
        %v1054 = vld [vmem:[%s1051 + $0x8] sm:$0xf]
        %v1055 = vld [vmem:[%s1051 + $0xc] sm:$0xf]
        %v1056 = vld [vmem:[%s1051 + $0x10] sm:$0xf]
        %v1057 = vld [vmem:[%s1051 + $0x14] sm:$0xf]
        %v1058 = vld [vmem:[%s1051 + $0x18] sm:$0xf]
        %v1059 = vld [vmem:[%s1051 + $0x1c] sm:$0xf]
        %v1060 = vld [vmem:[%s1051 + $0x20] sm:$0xf]
        %v1061 = vld [vmem:[%s1051 + $0x24] sm:$0xf]
        %v1062 = vld [vmem:[%s1051 + $0x28] sm:$0xf]
        %v1063 = vld [vmem:[%s1051 + $0x2c] sm:$0xf]
        %v1064 = vld [vmem:[%s1051 + $0x30] sm:$0xf]
        %v1065 = vld [vmem:[%s1051 + $0x34] sm:$0xf]
        %v1066 = vld [vmem:[%s1051 + $0x38] sm:$0xf]
        %v1067 = vld [vmem:[%s1051 + $0x3c] sm:$0xf]
        %v1068 = vld [vmem:[%s1051 + $0x40] sm:$0xf]
        %v1069 = vld [vmem:[%s1051 + $0x44] sm:$0xf]
        %v1070 = vld [vmem:[%s1051 + $0x48] sm:$0xf]
        %v1071 = vld [vmem:[%s1051 + $0x4c] sm:$0xf]
        %s1072 = scalar_lea.vmem %s5, 2
        %v1073 = vld [vmem:[%s1072] sm:$0x1]
        %v1075 = vlaneseq
        %v1076 = vshrl.u32 %v1075, 7
        %v1077 = vsub.s32 0, %v1076
        %v1078 = vrot.slane %v1073, %v1077
        %v1100 = vunpack.c.l.b16 %v1052
        %v1101 = vunpack.c.l.b16 %v1053
        %v1102 = vunpack.c.l.b16 %v1054
        %v1103 = vunpack.c.l.b16 %v1055
        %v1104 = vunpack.c.l.b16 %v1056
        %v1105 = vunpack.c.l.b16 %v1057
        %v1106 = vunpack.c.l.b16 %v1058
        %v1107 = vunpack.c.l.b16 %v1059
        %v1108 = vunpack.c.l.b16 %v1060
        %v1109 = vunpack.c.l.b16 %v1061
        %v1110 = vunpack.c.l.b16 %v1062
        %v1111 = vunpack.c.l.b16 %v1063
        %v1112 = vunpack.c.l.b16 %v1064
        %v1113 = vunpack.c.l.b16 %v1065
        %v1114 = vunpack.c.l.b16 %v1066
        %v1115 = vunpack.c.l.b16 %v1067
        %v1116 = vunpack.c.l.b16 %v1068
        %v1117 = vunpack.c.l.b16 %v1069
        %v1118 = vunpack.c.l.b16 %v1070
        %v1119 = vunpack.c.l.b16 %v1071
        %v1120 = vpack.c.b16 %v1101, %v1100
        %v1121 = vpack.c.b16 %v1103, %v1102
        %v1122 = vpack.c.b16 %v1105, %v1104
        %v1123 = vpack.c.b16 %v1107, %v1106
        %v1124 = vpack.c.b16 %v1109, %v1108
        %v1125 = vpack.c.b16 %v1111, %v1110
        %v1126 = vpack.c.b16 %v1113, %v1112
        %v1127 = vpack.c.b16 %v1115, %v1114
        %v1128 = vpack.c.b16 %v1117, %v1116
        %v1129 = vpack.c.b16 %v1119, %v1118
        %v1141 = vsel %vm455, %v1050, 0
        %1143 = vmatprep.subr.bf16.mxu0 0
        %1144 = vmatpush1.bf16.msra.mxu0 %v1127
        %1145 = vmatprep.subr.bf16.mxu0 0
        %1146 = vmatpush1.bf16.msra.mxu0 %v1126
        %1147 = vmatprep.subr.bf16.mxu0 0
        %1148 = vmatpush1.bf16.msra.mxu0 %v1125
        %1149 = vmatprep.subr.bf16.mxu0 0
        %1150 = vmatpush1.bf16.msra.mxu0 %v1124
        %1151 = vmatprep.subr.bf16.mxu0 0
        %1152 = vmatpush1.bf16.msra.mxu0 %v1123
        %1153 = vmatprep.subr.bf16.mxu0 0
        %1154 = vmatpush1.bf16.msra.mxu0 %v1122
        %1155 = vmatprep.subr.bf16.mxu0 0
        %1156 = vmatpush1.bf16.msra.mxu0 %v1121
        %1157 = vmatprep.subr.bf16.mxu0 0
        %1158 = vmatpush1.bf16.msra.mxu0 %v1120
        %1159 = vmatprep.subr.bf16.mxu0 0
        %1160 = vmatpush2.bf16.msra.mxu0 0
        %1161 = vmatprep.subr.bf16.mxu0 0
        %1162 = vmatpush2.bf16.msra.mxu0 0
        %1163 = vmatprep.subr.bf16.mxu0 0
        %1164 = vmatpush2.bf16.msra.mxu0 0
        %1165 = vmatprep.subr.bf16.mxu0 0
        %1166 = vmatpush2.bf16.msra.mxu0 0
        %1167 = vmatprep.subr.bf16.mxu0 0
        %1168 = vmatpush2.bf16.msra.mxu0 0
        %1169 = vmatprep.subr.bf16.mxu0 0
        %1170 = vmatpush2.bf16.msra.mxu0 0
        %1171 = vmatprep.subr.bf16.mxu0 0
        %1172 = vmatpush2.bf16.msra.mxu0 %v1129
        %1173 = vmatprep.subr.bf16.mxu0 0
        %1174 = vmatpush2.bf16.msra.mxu0 %v1128
        %1175 = vmatprep.mubr.bf16.mxu0 %v1141
        %1176 = vmatmul.mubr.bf16.gmra.mxu0 %v1049
        %v1177 = vpop.f32.mrf.mxu0
        %v1178 = vadd.f32 %v1078, %v1177
        %v1179 = vpop.f32.mrf.mxu0
        %v1180 = vpop.f32.mrf.mxu0
        %v1181 = vadd.f32 %v1078, %v1180
        %v1182 = vpop.f32.mrf.mxu0
        %1183 = vdwg.mxu0
        %v1184 = vtanh.pop %v1178
        %v1185 = vtanh.pop %v1181
        %v1186 = vxor.u32 %v1178, 2147483648
        %v1187 = vxor.u32 %v1181, 2147483648
        %v1188 = vmul.f32 %v1186, 1.442695
        %v1189 = vpow.pop %v1188
        %v1190 = vmul.f32 %v1187, 1.442695
        %v1191 = vpow.pop %v1190
        %v1192 = vadd.f32 %v1189, 1.0
        %v1193 = vadd.f32 %v1191, 1.0
        %v1194 = vrcp.pop %v1192
        %v1195 = vmul.f32 1.0, %v1194
        %v1196 = vrcp.pop %v1193
        %v1197 = vmul.f32 1.0, %v1196
        %1200 = vrot.lane.b32.xlu0 %v1195, 96
        %v1201 = vpop.permute.xlu0 %1200
        %1202 = vrot.lane.b32.xlu0 %v1197, 96
        %v1203 = vpop.permute.xlu0 %1202
        %v1206 = vmul.f32 %v1184, %v1201
        %v1207 = vmul.f32 %v1185, %v1203
        %v1208 = vpack.c.bf16 %v1207, %v1206
        %s1209 = scalar_lea.vmem %s6, 32
        %v1210 = vld [vmem:[%s1209] sm:$0xf]
        %v1211 = vld [vmem:[%s1209 + $0x4] sm:$0xf]
        %v1212 = vld [vmem:[%s1209 + $0x8] sm:$0xf]
        %v1213 = vld [vmem:[%s1209 + $0xc] sm:$0xf]
        %s1214 = scalar_lea.vmem %s7, 2
        %v1215 = vld [vmem:[%s1214] sm:$0x1]
        %v1217 = vlaneseq
        %v1218 = vshrl.u32 %v1217, 7
        %v1219 = vsub.s32 0, %v1218
        %v1220 = vrot.slane %v1215, %v1219
        %v1226 = vunpack.c.l.b16 %v1210
        %v1227 = vunpack.c.l.b16 %v1211
        %v1228 = vunpack.c.l.b16 %v1212
        %v1229 = vunpack.c.l.b16 %v1213
        %v1230 = vpack.c.b16 %v1227, %v1226
        %v1231 = vpack.c.b16 %v1229, %v1228
        %v1235 = vsel %vm455, %v1208, 0
        %1237 = vmatprep.subr.bf16.mxu0 0
        %1238 = vmatpush1.bf16.msra.mxu0 0
        %1239 = vmatprep.subr.bf16.mxu0 0
        %1240 = vmatpush1.bf16.msra.mxu0 0
        %1241 = vmatprep.subr.bf16.mxu0 0
        %1242 = vmatpush1.bf16.msra.mxu0 0
        %1243 = vmatprep.subr.bf16.mxu0 0
        %1244 = vmatpush1.bf16.msra.mxu0 0
        %1245 = vmatprep.subr.bf16.mxu0 0
        %1246 = vmatpush1.bf16.msra.mxu0 0
        %1247 = vmatprep.subr.bf16.mxu0 0
        %1248 = vmatpush1.bf16.msra.mxu0 0
        %1249 = vmatprep.subr.bf16.mxu0 0
        %1250 = vmatpush1.bf16.msra.mxu0 %v1231
        %1251 = vmatprep.subr.bf16.mxu0 0
        %1252 = vmatpush1.bf16.msra.mxu0 %v1230
        %1253 = vmatprep.subr.bf16.mxu0 0
        %1254 = vmatpush2.bf16.msra.mxu0 0
        %1255 = vmatprep.subr.bf16.mxu0 0
        %1256 = vmatpush2.bf16.msra.mxu0 0
        %1257 = vmatprep.subr.bf16.mxu0 0
        %1258 = vmatpush2.bf16.msra.mxu0 0
        %1259 = vmatprep.subr.bf16.mxu0 0
        %1260 = vmatpush2.bf16.msra.mxu0 0
        %1261 = vmatprep.subr.bf16.mxu0 0
        %1262 = vmatpush2.bf16.msra.mxu0 0
        %1263 = vmatprep.subr.bf16.mxu0 0
        %1264 = vmatpush2.bf16.msra.mxu0 0
        %1265 = vmatprep.subr.bf16.mxu0 0
        %1266 = vmatpush2.bf16.msra.mxu0 0
        %1267 = vmatprep.subr.bf16.mxu0 0
        %1268 = vmatpush2.bf16.msra.mxu0 0
        %1269 = vmatprep.mubr.bf16.mxu0 0
        %1270 = vmatmul.mubr.bf16.gmra.mxu0 %v1235
        %v1271 = vpop.f32.mrf.mxu0
        %v1272 = vadd.f32 %v1220, %v1271
        %v1273 = vpop.f32.mrf.mxu0
        %v1274 = vpop.f32.mrf.mxu0
        %v1275 = vadd.f32 %v1220, %v1274
        %v1276 = vpop.f32.mrf.mxu0
        %1277 = vdwg.mxu0
        %v1278 = vadd.f32 %v1005, %v1272
        %v1279 = vadd.f32 %v1006, %v1275
        %v1280 = vmul.f32 %v1278, %v386
        %v1281 = vmul.f32 %v1279, %v391
        %v1282 = vpack.c.bf16 %v1281, %v1280
        %v1283 = vld [vmem:[%s8] sm:$0xf]
        %v1284 = vld [vmem:[%s8 + $0x4] sm:$0xf]
        %v1285 = vld [vmem:[%s8 + $0x8] sm:$0xf]
        %v1286 = vld [vmem:[%s8 + $0xc] sm:$0xf]
        %v1287 = vld [vmem:[%s9] sm:$0x1]
        %v1289 = vlaneseq
        %v1290 = vshrl.u32 %v1289, 7
        %v1291 = vsub.s32 0, %v1290
        %v1292 = vrot.slane %v1287, %v1291
        %1295 = vrot.lane.b32.xlu0 %v1282, 96
        %v1296 = vpop.permute.xlu0 %1295
        %v1301 = vunpack.c.l.b16 %v1283
        %v1302 = vunpack.c.l.b16 %v1284
        %v1303 = vunpack.c.l.b16 %v1285
        %v1304 = vunpack.c.l.b16 %v1286
        %v1305 = vpack.c.b16 %v1302, %v1301
        %v1306 = vpack.c.b16 %v1304, %v1303
        %v1310 = vsel %vm455, %v1296, 0
        %1312 = vmatprep.subr.bf16.mxu0 0
        %1313 = vmatpush1.bf16.msra.mxu0 0
        %1314 = vmatprep.subr.bf16.mxu0 0
        %1315 = vmatpush1.bf16.msra.mxu0 0
        %1316 = vmatprep.subr.bf16.mxu0 0
        %1317 = vmatpush1.bf16.msra.mxu0 0
        %1318 = vmatprep.subr.bf16.mxu0 0
        %1319 = vmatpush1.bf16.msra.mxu0 0
        %1320 = vmatprep.subr.bf16.mxu0 0
        %1321 = vmatpush1.bf16.msra.mxu0 0
        %1322 = vmatprep.subr.bf16.mxu0 0
        %1323 = vmatpush1.bf16.msra.mxu0 0
        %1324 = vmatprep.subr.bf16.mxu0 0
        %1325 = vmatpush1.bf16.msra.mxu0 %v1306
        %1326 = vmatprep.subr.bf16.mxu0 0
        %1327 = vmatpush1.bf16.msra.mxu0 %v1305
        %1328 = vmatprep.subr.bf16.mxu0 0
        %1329 = vmatpush2.bf16.msra.mxu0 0
        %1330 = vmatprep.subr.bf16.mxu0 0
        %1331 = vmatpush2.bf16.msra.mxu0 0
        %1332 = vmatprep.subr.bf16.mxu0 0
        %1333 = vmatpush2.bf16.msra.mxu0 0
        %1334 = vmatprep.subr.bf16.mxu0 0
        %1335 = vmatpush2.bf16.msra.mxu0 0
        %1336 = vmatprep.subr.bf16.mxu0 0
        %1337 = vmatpush2.bf16.msra.mxu0 0
        %1338 = vmatprep.subr.bf16.mxu0 0
        %1339 = vmatpush2.bf16.msra.mxu0 0
        %1340 = vmatprep.subr.bf16.mxu0 0
        %1341 = vmatpush2.bf16.msra.mxu0 0
        %1342 = vmatprep.subr.bf16.mxu0 0
        %1343 = vmatpush2.bf16.msra.mxu0 0
        %1344 = vmatprep.mubr.bf16.mxu0 0
        %1345 = vmatmul.mubr.bf16.gmra.mxu0 %v1310
        %v1346 = vpop.f32.mrf.mxu0
        %v1347 = vadd.f32 %v1292, %v1346
        %v1348 = vpop.f32.mrf.mxu0
        %v1349 = vpop.f32.mrf.mxu0
        %v1350 = vadd.f32 %v1292, %v1349
        %v1351 = vpop.f32.mrf.mxu0
        %1352 = vdwg.mxu0
        %v1353 = vmul.f32 %v1347, %v386
        %v1354 = vmul.f32 %v1350, %v391
        %1355 = vst [vmem:[%s367] sm:$0xff] %v1353
        %1356 = vst [vmem:[%s367 + $0x8] sm:$0xff] %v1354
        %s1357 = sand.u32 %s252, 1
        %s1358 = scalar_lea.sflag [#allocation4], %s1357
        %s1359 = sand.u32 %s252, 1
        %s1360 = smul.addr %s1359, 16
        %s1361 = scalar_lea.vmem [#allocation3], %s1360
        // Predicated region
        $region61: #{tpu_custom_call.1} parent=59 // pred_check
          %p1362 = pneg %p262
        $region62: #{tpu_custom_call.1} parent=59 // pred_check_branch
          %1364 = sbr.rel (%p1362) target = $region64
        $region63: #{tpu_custom_call.1} parent=59 // pred_region
          %s1366 = ssub.s32 256, 256
          %1367 = vsyncadd %s1358, %s1366
          %s1368 = smul.addr %s24, 2
          %s1369 = smul.addr %s1368, 128
          %s1370 = scalar_lea.hbm %s10, %s1369
          %s1371 = sshll.u32 %s1361, 4
          %s1372 = int_to_ptr.vmem [resolvable:$true] %s1371
          %1377 = dma.vmem_to_hbm [thread:$0]  %s1372, 256, %s1370, %s1358, 128, 128, 8
        $region64: #{tpu_custom_call.1} parent=59 // pred_fallthru
          _
      $region60: #{tpu_custom_call.1} parent=5 // pred_fallthru
        _
      %p1378 = scmp.le.s32.totalorder 2, %s19
      // Predicated region
      $region65: #{tpu_custom_call.1} parent=5 // pred_check
        %p1379 = pneg %p1378
      $region66: #{tpu_custom_call.1} parent=5 // pred_check_branch
        %1381 = sbr.rel (%p1379) target = $region68
      $region67: #{tpu_custom_call.1} parent=5 // pred_region
        %s1382 = ssub.s32 %s19, 2
        // Predicated region
        $region69: #{tpu_custom_call.1} parent=67 // pred_check
          %p1383 = pneg %p268
        $region70: #{tpu_custom_call.1} parent=67 // pred_check_branch
          %1385 = sbr.rel (%p1383) target = $region72
        $region71: #{tpu_custom_call.1} parent=67 // pred_region
          %s1386 = sand.u32 %s253, 1
          %s1387 = scalar_lea.sflag [#allocation4], %s1386
          %s1388 = sand.u32 %s253, 1
          %s1389 = smul.addr %s1388, 16
          %s1390 = scalar_lea.vmem [#allocation3], %s1389
          %1391 = dma.done %s1387, 256
        $region72: #{tpu_custom_call.1} parent=67 // pred_fallthru
          _
      $region68: #{tpu_custom_call.1} parent=5 // pred_fallthru
        _
    $region6: #{tpu_custom_call.1} parent=1 // loop_footer
      %s23 = sadd.s32 1, %s19
    $region7: #{tpu_custom_call.1} parent=1 // loop_footer_branch
      %18 = sbr.rel target = $region3
    $region8: #{tpu_custom_call.1} parent=1 // loop_exit
      _
    %1392 = vsyncpa [#allocation4], 1
    %s1393 = scalar_lea.sflag [#allocation4], 1
    %1394 = vsyncpa %s1393, 1

</llo_original>
